<compile_context>
chip_gen: v6e
topology: v6e:2x2x1
jax: 0.10.0
libtpu: 0.0.40
codegen_flags: <defaults>
</compile_context>

<pallas_src>
import jax
import jax.numpy as jnp
from jax.experimental import pallas as pl
from jax.experimental.pallas import tpu as pltpu


def _round_up(x, m):
    return (x + m - 1) // m * m


def mf_bias_kernel(p1_ref, p2_ref,          # VMEM: (1, TB) int32 index tiles (lane-dense)
                   tab_a_ref, tab_b_ref,    # VMEM: (D_pad, V_pad) f32 augmented tables (resident)
                   out_ref):                # VMEM: (1, TB) f32 output block (lane-dense)
    v_pad = tab_a_ref.shape[1]
    tb_lanes = out_ref.shape[1]

    idx1 = p1_ref[...]                                              # (1, TB) int32
    idx2 = p2_ref[...]

    # One-hot selection matrices with batch on the lane axis.
    iota_v = jax.lax.broadcasted_iota(jnp.int32, (v_pad, tb_lanes), 0)
    oh1 = (iota_v == idx1).astype(jnp.float32)                      # (V_pad, TB)
    oh2 = (iota_v == idx2).astype(jnp.float32)                      # (V_pad, TB)

    # Vectorized gather on the MXU: (D_pad, V_pad) @ (V_pad, TB) -> (D_pad, TB).
    # HIGHEST precision so the gathered f32 table values are reproduced exactly
    # (default TPU matmul precision would round the table to bf16).
    e1 = jnp.dot(tab_a_ref[...], oh1,
                 preferred_element_type=jnp.float32,
                 precision=jax.lax.Precision.HIGHEST)               # (D_pad, TB)
    e2 = jnp.dot(tab_b_ref[...], oh2,
                 preferred_element_type=jnp.float32,
                 precision=jax.lax.Precision.HIGHEST)               # (D_pad, TB)

    # interaction + b[p1] + b[p2] + global_bias is exactly e1·e2 by table
    # construction (padded rows are zero and contribute nothing).
    scores = jnp.sum(e1 * e2, axis=0, keepdims=True)                # (1, TB)
    out_ref[...] = jax.nn.sigmoid(scores)                           # (1, TB)


def mf_bias_forward(product1, product2, emb_weight, bias_weight, global_bias,
                    *, block_b=1024):
    """Forward pass of MFBias.

    product1, product2: int (B,) indices
    emb_weight:          (emb_size, emb_dim) float
    bias_weight:         (emb_size, 1) float
    global_bias:         (1,) float
    returns:             (B,) float32 sigmoid predictions
    """
    B = product1.shape[0]
    V, D = emb_weight.shape

    # ---- Table prep (tiny, O(V*D)): fold per-product bias + global bias into
    # an augmented, transposed, padded pair of tables. ----
    E = emb_weight.astype(jnp.float32)
    b = bias_weight.reshape(V).astype(jnp.float32)
    gb = global_bias.reshape(()).astype(jnp.float32)
    ones_col = jnp.ones((V, 1), jnp.float32)
    #   A[v] = [E[v], b[v]+gb, 1]
    #   B[v] = [E[v], 1,       b[v]]
    # => A[p1]·B[p2] = E[p1]·E[p2] + b[p1] + gb + b[p2]  (interaction + biases)
    tab_a = jnp.concatenate([E, (b + gb)[:, None], ones_col], axis=1)   # (V, D+2)
    tab_b = jnp.concatenate([E, ones_col, b[:, None]], axis=1)          # (V, D+2)

    d_aug = D + 2
    d_pad = _round_up(d_aug, 8)          # sublane-aligned
    v_pad = _round_up(V, 128)            # lane / MXU-contraction aligned
    tab_a_t = jnp.zeros((d_pad, v_pad), jnp.float32).at[:d_aug, :V].set(tab_a.T)
    tab_b_t = jnp.zeros((d_pad, v_pad), jnp.float32).at[:d_aug, :V].set(tab_b.T)

    # ---- Batch tiling: lane-dense tiles, TB a multiple of 128. ----
    tb = max(128, min(_round_up(int(block_b), 128), _round_up(B, 128)))
    b_pad = _round_up(B, tb)
    num_tiles = b_pad // tb

    # Pad index vectors with 0 (a valid row); padded lanes are dropped below.
    p1 = jnp.pad(product1.astype(jnp.int32), (0, b_pad - B)).reshape(1, b_pad)
    p2 = jnp.pad(product2.astype(jnp.int32), (0, b_pad - B)).reshape(1, b_pad)

    # VMEM budget: 2 resident tables (double-buffered by the pipeline) plus the
    # lane-dense per-tile working set (index tiles, one-hots, gathered acts).
    table_bytes = 2 * 2 * d_pad * v_pad * 4
    work_bytes = (2 * v_pad + 2 * d_pad + 8) * tb * 4
    vmem_limit = min(64 * 1024 * 1024,
                     max(32 * 1024 * 1024, 2 * (table_bytes + work_bytes)))

    grid_spec = pl.GridSpec(
        grid=(num_tiles,),
        in_specs=[
            pl.BlockSpec((1, tb), lambda i: (0, i)),           # p1 tile (lane-dense)
            pl.BlockSpec((1, tb), lambda i: (0, i)),           # p2 tile (lane-dense)
            pl.BlockSpec((d_pad, v_pad), lambda i: (0, 0)),    # table A (resident)
            pl.BlockSpec((d_pad, v_pad), lambda i: (0, 0)),    # table B (resident)
        ],
        out_specs=pl.BlockSpec((1, tb), lambda i: (0, i)),     # lane-dense output row
    )

    out = pl.pallas_call(
        mf_bias_kernel,
        out_shape=jax.ShapeDtypeStruct((1, b_pad), jnp.float32),
        grid_spec=grid_spec,
        compiler_params=pltpu.CompilerParams(
            dimension_semantics=("parallel",),     # batch tiles are independent
            vmem_limit_bytes=int(vmem_limit),
        ),
    )(p1, p2, tab_a_t, tab_b_t)

    return out[0, :B]


def mf_bias_reference(product1, product2, emb_weight, bias_weight, global_bias):
    emb1 = emb_weight[product1]
    emb2 = emb_weight[product2]
    interaction = jnp.sum(emb1 * emb2, axis=1).astype(jnp.float32)
    biases = global_bias[0] + bias_weight[product1, 0] + bias_weight[product2, 0]
    return jax.nn.sigmoid(interaction + biases)


if __name__ == "__main__":
    emb_size = 16   # vocabulary of products
    emb_dim = 32    # embedding dimension
    B = 8           # batch of (product1, product2) pairs

    key = jax.random.PRNGKey(0)
    k_emb, k_bias, k_p1, k_p2 = jax.random.split(key, 4)

    # Deterministic parameter init (nn.Embedding ~ N(0,1); bias = ones(1)).
    emb_weight = jax.random.normal(k_emb, (emb_size, emb_dim), dtype=jnp.float32)
    bias_weight = jax.random.normal(k_bias, (emb_size, 1), dtype=jnp.float32)
    global_bias = jnp.ones((1,), dtype=jnp.float32)

    product1 = jax.random.randint(k_p1, (B,), 0, emb_size, dtype=jnp.int32)
    product2 = jax.random.randint(k_p2, (B,), 0, emb_size, dtype=jnp.int32)

    pred = mf_bias_forward(product1, product2, emb_weight, bias_weight, global_bias)
    pred = jax.block_until_ready(pred)

    ref = mf_bias_reference(product1, product2, emb_weight, bias_weight, global_bias)
    assert pred.shape == (B,)
    assert jnp.allclose(pred, ref, atol=1e-5, rtol=1e-5), (pred, ref)

    print("KERNEL_OK")
</pallas_src>

<mosaic_0001>
module attributes {stable_mosaic.version = 11 : i64} {
  func.func @mf_bias_kernel(%arg0: i32, %arg1: memref<1x128xi32, #tpu.memory_space<vmem>>, %arg2: memref<1x128xi32, #tpu.memory_space<vmem>>, %arg3: memref<40x128xf32, #tpu.memory_space<vmem>>, %arg4: memref<40x128xf32, #tpu.memory_space<vmem>>, %arg5: memref<1x128xf32, #tpu.memory_space<vmem>>) attributes {dimension_semantics = [#tpu.dimension_semantics<parallel>], iteration_bounds = array<i64: 1>, scalar_prefetch = 0 : i64, scratch_operands = 0 : i64, tpu.core_type = #tpu.core_type<tc>, window_params = [{transform_indices = @transform_0, window_bounds = array<i64: 1, 128>}, {transform_indices = @transform_1, window_bounds = array<i64: 1, 128>}, {pipeline_mode = #tpu.pipeline_mode<synchronous>, transform_indices = @transform_2, window_bounds = array<i64: 40, 128>}, {pipeline_mode = #tpu.pipeline_mode<synchronous>, transform_indices = @transform_3, window_bounds = array<i64: 40, 128>}, {transform_indices = @transform_4, window_bounds = array<i64: 1, 128>}]} {
    %c0 = arith.constant 0 : index
    %c0_0 = arith.constant 0 : index
    %0 = vector.load %arg1[%c0, %c0_0] : memref<1x128xi32, #tpu.memory_space<vmem>>, vector<1x128xi32>
    %c0_1 = arith.constant 0 : index
    %c0_2 = arith.constant 0 : index
    %1 = vector.load %arg2[%c0_1, %c0_2] : memref<1x128xi32, #tpu.memory_space<vmem>>, vector<1x128xi32>
    %2 = tpu.iota {dimensions = array<i32: 0>} : vector<128x128xi32>
    %3 = vector.broadcast %0 : vector<1x128xi32> to vector<128x128xi32>
    %4 = arith.cmpi eq, %2, %3 : vector<128x128xi32>
    %5 = arith.extui %4 : vector<128x128xi1> to vector<128x128xi32>
    %6 = arith.sitofp %5 : vector<128x128xi32> to vector<128x128xf32>
    %7 = vector.broadcast %1 : vector<1x128xi32> to vector<128x128xi32>
    %8 = arith.cmpi eq, %2, %7 : vector<128x128xi32>
    %9 = arith.extui %8 : vector<128x128xi1> to vector<128x128xi32>
    %10 = arith.sitofp %9 : vector<128x128xi32> to vector<128x128xf32>
    %c0_3 = arith.constant 0 : index
    %c0_4 = arith.constant 0 : index
    %11 = vector.load %arg3[%c0_3, %c0_4] : memref<40x128xf32, #tpu.memory_space<vmem>>, vector<40x128xf32>
    %cst = arith.constant dense<0.000000e+00> : vector<40x128xf32>
    %12 = tpu.matmul %11, %6, %cst {dimension_numbers = #tpu.dot_dimension_numbers<[1], [0], [0], [1], [0, 0, 1, 1], [], []>, precision = #tpu.contract_precision<fp32>} : vector<40x128xf32>, vector<128x128xf32>, vector<40x128xf32> -> vector<40x128xf32>
    %c0_5 = arith.constant 0 : index
    %c0_6 = arith.constant 0 : index
    %13 = vector.load %arg4[%c0_5, %c0_6] : memref<40x128xf32, #tpu.memory_space<vmem>>, vector<40x128xf32>
    %cst_7 = arith.constant dense<0.000000e+00> : vector<40x128xf32>
    %14 = tpu.matmul %13, %10, %cst_7 {dimension_numbers = #tpu.dot_dimension_numbers<[1], [0], [0], [1], [0, 0, 1, 1], [], []>, precision = #tpu.contract_precision<fp32>} : vector<40x128xf32>, vector<128x128xf32>, vector<40x128xf32> -> vector<40x128xf32>
    %15 = arith.mulf %12, %14 : vector<40x128xf32>
    %cst_8 = arith.constant dense<0.000000e+00> : vector<128xf32>
    %16 = vector.multi_reduction <add>, %15, %cst_8 [0] : vector<40x128xf32> to vector<128xf32>
    %17 = vector.shape_cast %16 : vector<128xf32> to vector<1x128xf32>
    %18 = arith.negf %17 : vector<1x128xf32>
    %19 = math.exp %18 : vector<1x128xf32>
    %cst_9 = arith.constant 1.000000e+00 : f32
    %20 = vector.broadcast %cst_9 : f32 to vector<1x128xf32>
    %21 = arith.addf %20, %19 : vector<1x128xf32>
    %22 = arith.divf %20, %21 : vector<1x128xf32>
    %c0_10 = arith.constant 0 : index
    %c0_11 = arith.constant 0 : index
    %23 = vector.load %arg5[%c0_10, %c0_11] : memref<1x128xf32, #tpu.memory_space<vmem>>, vector<1x128xf32>
    tpu.vector_store %arg5[%c0_10, %c0_11], %22 {strides = array<i32>} : memref<1x128xf32, #tpu.memory_space<vmem>>, vector<1x128xf32>,
    return
  }
  func.func @transform_0(%arg0: i32) -> (i32, i32) {
    %c0_i32 = arith.constant 0 : i32
    %c0_i32_0 = arith.constant 0 : i32
    return %c0_i32, %arg0 : i32, i32
  }
  func.func @transform_1(%arg0: i32) -> (i32, i32) {
    %c0_i32 = arith.constant 0 : i32
    %c0_i32_0 = arith.constant 0 : i32
    return %c0_i32, %arg0 : i32, i32
  }
  func.func @transform_2(%arg0: i32) -> (i32, i32) {
    %c0_i32 = arith.constant 0 : i32
    %c0_i32_0 = arith.constant 0 : i32
    %c0_i32_1 = arith.constant 0 : i32
    return %c0_i32, %c0_i32_0 : i32, i32
  }
  func.func @transform_3(%arg0: i32) -> (i32, i32) {
    %c0_i32 = arith.constant 0 : i32
    %c0_i32_0 = arith.constant 0 : i32
    %c0_i32_1 = arith.constant 0 : i32
    return %c0_i32, %c0_i32_0 : i32, i32
  }
  func.func @transform_4(%arg0: i32) -> (i32, i32) {
    %c0_i32 = arith.constant 0 : i32
    %c0_i32_0 = arith.constant 0 : i32
    return %c0_i32, %arg0 : i32, i32
  }
}

</mosaic_0001>

<llo_original>
// kernel: tpu_custom_call.1
$region0: #{tpu_custom_call.1}
  #allocation0 [shape = 'u32[]', space=smem, size = 0x4, offset = 0x4, fixed_abs, tag = 'smem constant byte address 0x4 - core index']
  #allocation1 [shape = 'u32[144,128]{1,0:T(1,128)}', space=vmem, size = 0x12000, scoped, tag = 'internal scratch']
  %s0 = inlined_call_operand.hbm [shape: s32[1,128], index: 0, kind: input, shape index: {}]
  %s1 = inlined_call_operand.vmem [shape: s32[1,128], index: 1, kind: input, shape index: {}]
  %s2 = inlined_call_operand.hbm [shape: f32[40,128], index: 2, kind: input, shape index: {}]
  %s3 = inlined_call_operand.hbm [shape: f32[40,128], index: 3, kind: input, shape index: {}]
  %s4 = inlined_call_operand.hbm [shape: f32[1,128], index: 4, kind: output, shape index: {}]
  %s5 = sld [smem:[#allocation0]]
  $region38: #{tpu_custom_call.1} parent=0
    _
  %s7 = ssub.s32 1, %s5
  %s8 = scalar_select 0, %s7, %s5
  $region1: #{tpu_custom_call.1} parent=0
    #allocation2 [shape = 'u8[512]{0}', space=vmem, size = 0x400, scoped, tag = 'input window, operand 0, single buffered']
    #allocation3 [shape = 's32[1]{0}', space=sflag, size = 0x4, scoped, tag = 'scoped memory for tpu_custom_call.1']
    #allocation4 [shape = 's32[1]{0}', space=sflag, size = 0x4, scoped, tag = 'scoped memory for tpu_custom_call.1']
    #allocation5 [shape = 'u8[20480]{0}', space=vmem, size = 0x5000, scoped, tag = 'input window, operand 2, single buffered']
    #allocation6 [shape = 's32[1]{0}', space=sflag, size = 0x4, scoped, tag = 'scoped memory for tpu_custom_call.1']
    #allocation7 [shape = 'u8[20480]{0}', space=vmem, size = 0x5000, scoped, tag = 'input window, operand 3, single buffered']
    #allocation8 [shape = 'u8[512]{0}', space=vmem, size = 0x400, scoped, tag = 'output window, operand 0, single buffered']
    %9 = vsyncpa [#allocation3], 0
    %10 = vsyncpa [#allocation6], 0
    %11 = vsyncpa [#allocation4], 0
    // Predicated region
    $region2: #{tpu_custom_call.1} parent=1 // pred_check
      _
    $region3: #{tpu_custom_call.1} parent=1 // pred_check_branch
      %13 = sbr.rel (0) target = $region5
    $region4: #{tpu_custom_call.1} parent=1 // pred_region
      %s15 = ssub.s32 16, 16
      %16 = vsyncadd [#allocation3], %s15
      %s18 = sshll.u32 [#allocation2], 4
      %s19 = int_to_ptr.vmem [resolvable:$true] %s18
      %21 = dma.hbm_to_vmem [thread:$0]  %s0, 16, %s19, [#allocation3]
    $region5: #{tpu_custom_call.1} parent=1 // pred_fallthru
      _
    // Predicated region
    $region6: #{tpu_custom_call.1} parent=1 // pred_check
      _
    $region7: #{tpu_custom_call.1} parent=1 // pred_check_branch
      %23 = sbr.rel (0) target = $region9
    $region8: #{tpu_custom_call.1} parent=1 // pred_region
      _
    $region9: #{tpu_custom_call.1} parent=1 // pred_fallthru
      _
    // Predicated region
    $region10: #{tpu_custom_call.1} parent=1 // pred_check
      _
    $region11: #{tpu_custom_call.1} parent=1 // pred_check_branch
      %25 = sbr.rel (0) target = $region13
    $region12: #{tpu_custom_call.1} parent=1 // pred_region
      %s27 = ssub.s32 640, 640
      %28 = vsyncadd [#allocation6], %s27
      %s29 = sshll.u32 [#allocation5], 4
      %s30 = int_to_ptr.vmem [resolvable:$true] %s29
      %35 = dma.hbm_to_vmem [thread:$0]  %s2, 640, %s30, [#allocation6], 128, 128, 8
    $region13: #{tpu_custom_call.1} parent=1 // pred_fallthru
      _
    // Predicated region
    $region14: #{tpu_custom_call.1} parent=1 // pred_check
      _
    $region15: #{tpu_custom_call.1} parent=1 // pred_check_branch
      %37 = sbr.rel (0) target = $region17
    $region16: #{tpu_custom_call.1} parent=1 // pred_region
      %s39 = ssub.s32 640, 640
      %40 = vsyncadd [#allocation6], %s39
      %s41 = sshll.u32 [#allocation7], 4
      %s42 = int_to_ptr.vmem [resolvable:$true] %s41
      %47 = dma.hbm_to_vmem [thread:$0]  %s3, 640, %s42, [#allocation6], 128, 128, 8
    $region17: #{tpu_custom_call.1} parent=1 // pred_fallthru
      _
    // Predicated region
    $region18: #{tpu_custom_call.1} parent=1 // pred_check
      _
    $region19: #{tpu_custom_call.1} parent=1 // pred_check_branch
      %49 = sbr.rel (0) target = $region21
    $region20: #{tpu_custom_call.1} parent=1 // pred_region
      %50 = dma.done [#allocation3], 16
    $region21: #{tpu_custom_call.1} parent=1 // pred_fallthru
      _
    // Predicated region
    $region22: #{tpu_custom_call.1} parent=1 // pred_check
      _
    $region23: #{tpu_custom_call.1} parent=1 // pred_check_branch
      %52 = sbr.rel (0) target = $region25
    $region24: #{tpu_custom_call.1} parent=1 // pred_region
      %53 = dma.done [#allocation6], 640
    $region25: #{tpu_custom_call.1} parent=1 // pred_fallthru
      _
    // Predicated region
    $region26: #{tpu_custom_call.1} parent=1 // pred_check
      _
    $region27: #{tpu_custom_call.1} parent=1 // pred_check_branch
      %55 = sbr.rel (0) target = $region29
    $region28: #{tpu_custom_call.1} parent=1 // pred_region
      %56 = dma.done [#allocation6], 640
    $region29: #{tpu_custom_call.1} parent=1 // pred_fallthru
      _
    %v57 = vld [vmem:[#allocation2] sm:$0x1]
    %v58 = vld [vmem:[%s1] sm:$0x1]
    %v59 = vlaneseq
    %v60 = vshrl.u32 %v59, 7
    %v61 = vadd.s32 %v60, 8
    %v62 = vadd.s32 %v60, 16
    %v63 = vadd.s32 %v60, 24
    %v64 = vadd.s32 %v60, 32
    %v65 = vadd.s32 %v60, 40
    %v66 = vadd.s32 %v60, 48
    %v67 = vadd.s32 %v60, 56
    %v68 = vadd.s32 %v60, 64
    %v69 = vadd.s32 %v60, 72
    %v70 = vadd.s32 %v60, 80
    %v71 = vadd.s32 %v60, 88
    %v72 = vadd.s32 %v60, 96
    %v73 = vadd.s32 %v60, 104
    %v74 = vadd.s32 %v60, 112
    %v75 = vadd.s32 %v60, 120
    %v76 = vlaneseq
    %v77 = vshrl.u32 %v76, 7
    %v78 = vsub.s32 0, %v77
    %v79 = vrot.slane %v57, %v78
    %vm80 = vcmp.eq.s32.totalorder %v60, %v79
    %vm81 = vcmp.eq.s32.totalorder %v61, %v79
    %vm82 = vcmp.eq.s32.totalorder %v62, %v79
    %vm83 = vcmp.eq.s32.totalorder %v63, %v79
    %vm84 = vcmp.eq.s32.totalorder %v64, %v79
    %vm85 = vcmp.eq.s32.totalorder %v65, %v79
    %vm86 = vcmp.eq.s32.totalorder %v66, %v79
    %vm87 = vcmp.eq.s32.totalorder %v67, %v79
    %vm88 = vcmp.eq.s32.totalorder %v68, %v79
    %vm89 = vcmp.eq.s32.totalorder %v69, %v79
    %vm90 = vcmp.eq.s32.totalorder %v70, %v79
    %vm91 = vcmp.eq.s32.totalorder %v71, %v79
    %vm92 = vcmp.eq.s32.totalorder %v72, %v79
    %vm93 = vcmp.eq.s32.totalorder %v73, %v79
    %vm94 = vcmp.eq.s32.totalorder %v74, %v79
    %vm95 = vcmp.eq.s32.totalorder %v75, %v79
    %v96 = vsel %vm80, 1, 0
    %v97 = vsel %vm81, 1, 0
    %v98 = vsel %vm82, 1, 0
    %v99 = vsel %vm83, 1, 0
    %v100 = vsel %vm84, 1, 0
    %v101 = vsel %vm85, 1, 0
    %v102 = vsel %vm86, 1, 0
    %v103 = vsel %vm87, 1, 0
    %v104 = vsel %vm88, 1, 0
    %v105 = vsel %vm89, 1, 0
    %v106 = vsel %vm90, 1, 0
    %v107 = vsel %vm91, 1, 0
    %v108 = vsel %vm92, 1, 0
    %v109 = vsel %vm93, 1, 0
    %v110 = vsel %vm94, 1, 0
    %v111 = vsel %vm95, 1, 0
    %v112 = vcvt.s32.f32 %v96
    %v113 = vcvt.s32.f32 %v97
    %v114 = vcvt.s32.f32 %v98
    %v115 = vcvt.s32.f32 %v99
    %v116 = vcvt.s32.f32 %v100
    %v117 = vcvt.s32.f32 %v101
    %v118 = vcvt.s32.f32 %v102
    %v119 = vcvt.s32.f32 %v103
    %v120 = vcvt.s32.f32 %v104
    %v121 = vcvt.s32.f32 %v105
    %v122 = vcvt.s32.f32 %v106
    %v123 = vcvt.s32.f32 %v107
    %v124 = vcvt.s32.f32 %v108
    %v125 = vcvt.s32.f32 %v109
    %v126 = vcvt.s32.f32 %v110
    %v127 = vcvt.s32.f32 %v111
    %v128 = vlaneseq
    %v129 = vshrl.u32 %v128, 7
    %v130 = vsub.s32 0, %v129
    %v131 = vrot.slane %v58, %v130
    %vm132 = vcmp.eq.s32.totalorder %v60, %v131
    %vm133 = vcmp.eq.s32.totalorder %v61, %v131
    %vm134 = vcmp.eq.s32.totalorder %v62, %v131
    %vm135 = vcmp.eq.s32.totalorder %v63, %v131
    %vm136 = vcmp.eq.s32.totalorder %v64, %v131
    %vm137 = vcmp.eq.s32.totalorder %v65, %v131
    %vm138 = vcmp.eq.s32.totalorder %v66, %v131
    %vm139 = vcmp.eq.s32.totalorder %v67, %v131
    %vm140 = vcmp.eq.s32.totalorder %v68, %v131
    %vm141 = vcmp.eq.s32.totalorder %v69, %v131
    %vm142 = vcmp.eq.s32.totalorder %v70, %v131
    %vm143 = vcmp.eq.s32.totalorder %v71, %v131
    %vm144 = vcmp.eq.s32.totalorder %v72, %v131
    %vm145 = vcmp.eq.s32.totalorder %v73, %v131
    %vm146 = vcmp.eq.s32.totalorder %v74, %v131
    %vm147 = vcmp.eq.s32.totalorder %v75, %v131
    %v148 = vsel %vm132, 1, 0
    %v149 = vsel %vm133, 1, 0
    %v150 = vsel %vm134, 1, 0
    %v151 = vsel %vm135, 1, 0
    %v152 = vsel %vm136, 1, 0
    %v153 = vsel %vm137, 1, 0
    %v154 = vsel %vm138, 1, 0
    %v155 = vsel %vm139, 1, 0
    %v156 = vsel %vm140, 1, 0
    %v157 = vsel %vm141, 1, 0
    %v158 = vsel %vm142, 1, 0
    %v159 = vsel %vm143, 1, 0
    %v160 = vsel %vm144, 1, 0
    %v161 = vsel %vm145, 1, 0
    %v162 = vsel %vm146, 1, 0
    %v163 = vsel %vm147, 1, 0
    %v164 = vcvt.s32.f32 %v148
    %v165 = vcvt.s32.f32 %v149
    %v166 = vcvt.s32.f32 %v150
    %v167 = vcvt.s32.f32 %v151
    %v168 = vcvt.s32.f32 %v152
    %v169 = vcvt.s32.f32 %v153
    %v170 = vcvt.s32.f32 %v154
    %v171 = vcvt.s32.f32 %v155
    %v172 = vcvt.s32.f32 %v156
    %v173 = vcvt.s32.f32 %v157
    %v174 = vcvt.s32.f32 %v158
    %v175 = vcvt.s32.f32 %v159
    %v176 = vcvt.s32.f32 %v160
    %v177 = vcvt.s32.f32 %v161
    %v178 = vcvt.s32.f32 %v162
    %v179 = vcvt.s32.f32 %v163
    %v180 = vld [vmem:[#allocation5] sm:$0xff]
    %v181 = vld [vmem:[#allocation5 + $0x8] sm:$0xff]
    %v182 = vld [vmem:[#allocation5 + $0x10] sm:$0xff]
    %v183 = vld [vmem:[#allocation5 + $0x18] sm:$0xff]
    %v184 = vld [vmem:[#allocation5 + $0x20] sm:$0xff]
    %185 = vmatprep.subr.mxu0 0.0
    %v186 = vand.u32 %v127, 4294901760
    %187 = vmatpush1.msra.mxu0 %v186
    %188 = vmatprep.subr.mxu0 0.0
    %v189 = vand.u32 %v126, 4294901760
    %190 = vmatpush1.msra.mxu0 %v189
    %191 = vmatprep.subr.mxu0 0.0
    %v192 = vand.u32 %v125, 4294901760
    %193 = vmatpush1.msra.mxu0 %v192
    %194 = vmatprep.subr.mxu0 0.0
    %v195 = vand.u32 %v124, 4294901760
    %196 = vmatpush1.msra.mxu0 %v195
    %197 = vmatprep.subr.mxu0 0.0
    %v198 = vand.u32 %v123, 4294901760
    %199 = vmatpush1.msra.mxu0 %v198
    %200 = vmatprep.subr.mxu0 0.0
    %v201 = vand.u32 %v122, 4294901760
    %202 = vmatpush1.msra.mxu0 %v201
    %203 = vmatprep.subr.mxu0 0.0
    %v204 = vand.u32 %v121, 4294901760
    %205 = vmatpush1.msra.mxu0 %v204
    %206 = vmatprep.subr.mxu0 0.0
    %v207 = vand.u32 %v120, 4294901760
    %208 = vmatpush1.msra.mxu0 %v207
    %209 = vmatprep.subr.mxu0 0.0
    %v210 = vand.u32 %v119, 4294901760
    %211 = vmatpush1.msra.mxu0 %v210
    %212 = vmatprep.subr.mxu0 0.0
    %v213 = vand.u32 %v118, 4294901760
    %214 = vmatpush1.msra.mxu0 %v213
    %215 = vmatprep.subr.mxu0 0.0
    %v216 = vand.u32 %v117, 4294901760
    %217 = vmatpush1.msra.mxu0 %v216
    %218 = vmatprep.subr.mxu0 0.0
    %v219 = vand.u32 %v116, 4294901760
    %220 = vmatpush1.msra.mxu0 %v219
    %221 = vmatprep.subr.mxu0 0.0
    %v222 = vand.u32 %v115, 4294901760
    %223 = vmatpush1.msra.mxu0 %v222
    %224 = vmatprep.subr.mxu0 0.0
    %v225 = vand.u32 %v114, 4294901760
    %226 = vmatpush1.msra.mxu0 %v225
    %227 = vmatprep.subr.mxu0 0.0
    %v228 = vand.u32 %v113, 4294901760
    %229 = vmatpush1.msra.mxu0 %v228
    %230 = vmatprep.subr.mxu0 0.0
    %v231 = vand.u32 %v112, 4294901760
    %232 = vmatpush1.msra.mxu0 %v231
    %233 = vmatprep.subr.mxu0 0.0
    %234 = vmatpush2.msra.mxu0 0.0
    %235 = vmatprep.subr.mxu0 0.0
    %236 = vmatpush2.msra.mxu0 0.0
    %237 = vmatprep.subr.mxu0 0.0
    %238 = vmatpush2.msra.mxu0 0.0
    %239 = vmatprep.subr.mxu0 0.0
    %240 = vmatpush2.msra.mxu0 0.0
    %241 = vmatprep.subr.mxu0 0.0
    %242 = vmatpush2.msra.mxu0 0.0
    %243 = vmatprep.subr.mxu0 0.0
    %244 = vmatpush2.msra.mxu0 0.0
    %245 = vmatprep.subr.mxu0 0.0
    %246 = vmatpush2.msra.mxu0 0.0
    %247 = vmatprep.subr.mxu0 0.0
    %248 = vmatpush2.msra.mxu0 0.0
    %249 = vmatprep.subr.mxu0 0.0
    %250 = vmatpush2.msra.mxu0 0.0
    %251 = vmatprep.subr.mxu0 0.0
    %252 = vmatpush2.msra.mxu0 0.0
    %253 = vmatprep.subr.mxu0 0.0
    %254 = vmatpush2.msra.mxu0 0.0
    %255 = vmatprep.subr.mxu0 0.0
    %256 = vmatpush2.msra.mxu0 0.0
    %257 = vmatprep.subr.mxu0 0.0
    %258 = vmatpush2.msra.mxu0 0.0
    %259 = vmatprep.subr.mxu0 0.0
    %260 = vmatpush2.msra.mxu0 0.0
    %261 = vmatprep.subr.mxu0 0.0
    %262 = vmatpush2.msra.mxu0 0.0
    %263 = vmatprep.subr.mxu0 0.0
    %264 = vmatpush2.msra.mxu0 0.0
    %265 = vmatprep.mubr.f32.mxu0 0.0
    %v266 = vand.u32 %v180, 4294901760
    %v267 = vsub.f32 %v180, %v266
    %v268 = vand.u32 %v267, 4294901760
    %v269 = vsub.f32 %v267, %v268
    %v270 = vand.u32 %v269, 4294901760
    %271 = vmatmul.mubr.f32.gmra.mxu0 %v270
    %v272 = vpop.f32.mrf.mxu0
    %v273 = vadd.f32 0.0, %v272
    %v274 = vpop.f32.mrf.mxu0
    %275 = vmatprep.mubr.f32.mxu0 0.0
    %v276 = vand.u32 %v181, 4294901760
    %v277 = vsub.f32 %v181, %v276
    %v278 = vand.u32 %v277, 4294901760
    %v279 = vsub.f32 %v277, %v278
    %v280 = vand.u32 %v279, 4294901760
    %281 = vmatmul.mubr.f32.gmra.mxu0 %v280
    %v282 = vpop.f32.mrf.mxu0
    %v283 = vadd.f32 0.0, %v282
    %v284 = vpop.f32.mrf.mxu0
    %285 = vmatprep.mubr.f32.mxu0 0.0
    %v286 = vand.u32 %v182, 4294901760
    %v287 = vsub.f32 %v182, %v286
    %v288 = vand.u32 %v287, 4294901760
    %v289 = vsub.f32 %v287, %v288
    %v290 = vand.u32 %v289, 4294901760
    %291 = vmatmul.mubr.f32.gmra.mxu0 %v290
    %v292 = vpop.f32.mrf.mxu0
    %v293 = vadd.f32 0.0, %v292
    %v294 = vpop.f32.mrf.mxu0
    %295 = vmatprep.mubr.f32.mxu0 0.0
    %v296 = vand.u32 %v183, 4294901760
    %v297 = vsub.f32 %v183, %v296
    %v298 = vand.u32 %v297, 4294901760
    %v299 = vsub.f32 %v297, %v298
    %v300 = vand.u32 %v299, 4294901760
    %301 = vmatmul.mubr.f32.gmra.mxu0 %v300
    %v302 = vpop.f32.mrf.mxu0
    %v303 = vadd.f32 0.0, %v302
    %v304 = vpop.f32.mrf.mxu0
    %305 = vmatprep.mubr.f32.mxu0 0.0
    %v306 = vand.u32 %v184, 4294901760
    %v307 = vsub.f32 %v184, %v306
    %v308 = vand.u32 %v307, 4294901760
    %v309 = vsub.f32 %v307, %v308
    %v310 = vand.u32 %v309, 4294901760
    %311 = vmatmul.mubr.f32.gmra.mxu0 %v310
    %v312 = vpop.f32.mrf.mxu0
    %v313 = vadd.f32 0.0, %v312
    %v314 = vpop.f32.mrf.mxu0
    %315 = vdwg.mxu0
    %316 = vmatprep.subr.mxu0 0.0
    %v317 = vand.u32 %v127, 4294901760
    %v318 = vsub.f32 %v127, %v317
    %v319 = vand.u32 %v318, 4294901760
    %v320 = vsub.f32 %v318, %v319
    %v321 = vand.u32 %v320, 4294901760
    %322 = vmatpush1.msra.mxu0 %v321
    %323 = vmatprep.subr.mxu0 0.0
    %v324 = vand.u32 %v126, 4294901760
    %v325 = vsub.f32 %v126, %v324
    %v326 = vand.u32 %v325, 4294901760
    %v327 = vsub.f32 %v325, %v326
    %v328 = vand.u32 %v327, 4294901760
    %329 = vmatpush1.msra.mxu0 %v328
    %330 = vmatprep.subr.mxu0 0.0
    %v331 = vand.u32 %v125, 4294901760
    %v332 = vsub.f32 %v125, %v331
    %v333 = vand.u32 %v332, 4294901760
    %v334 = vsub.f32 %v332, %v333
    %v335 = vand.u32 %v334, 4294901760
    %336 = vmatpush1.msra.mxu0 %v335
    %337 = vmatprep.subr.mxu0 0.0
    %v338 = vand.u32 %v124, 4294901760
    %v339 = vsub.f32 %v124, %v338
    %v340 = vand.u32 %v339, 4294901760
    %v341 = vsub.f32 %v339, %v340
    %v342 = vand.u32 %v341, 4294901760
    %343 = vmatpush1.msra.mxu0 %v342
    %344 = vmatprep.subr.mxu0 0.0
    %v345 = vand.u32 %v123, 4294901760
    %v346 = vsub.f32 %v123, %v345
    %v347 = vand.u32 %v346, 4294901760
    %v348 = vsub.f32 %v346, %v347
    %v349 = vand.u32 %v348, 4294901760
    %350 = vmatpush1.msra.mxu0 %v349
    %351 = vmatprep.subr.mxu0 0.0
    %v352 = vand.u32 %v122, 4294901760
    %v353 = vsub.f32 %v122, %v352
    %v354 = vand.u32 %v353, 4294901760
    %v355 = vsub.f32 %v353, %v354
    %v356 = vand.u32 %v355, 4294901760
    %357 = vmatpush1.msra.mxu0 %v356
    %358 = vmatprep.subr.mxu0 0.0
    %v359 = vand.u32 %v121, 4294901760
    %v360 = vsub.f32 %v121, %v359
    %v361 = vand.u32 %v360, 4294901760
    %v362 = vsub.f32 %v360, %v361
    %v363 = vand.u32 %v362, 4294901760
    %364 = vmatpush1.msra.mxu0 %v363
    %365 = vmatprep.subr.mxu0 0.0
    %v366 = vand.u32 %v120, 4294901760
    %v367 = vsub.f32 %v120, %v366
    %v368 = vand.u32 %v367, 4294901760
    %v369 = vsub.f32 %v367, %v368
    %v370 = vand.u32 %v369, 4294901760
    %371 = vmatpush1.msra.mxu0 %v370
    %372 = vmatprep.subr.mxu0 0.0
    %v373 = vand.u32 %v119, 4294901760
    %v374 = vsub.f32 %v119, %v373
    %v375 = vand.u32 %v374, 4294901760
    %v376 = vsub.f32 %v374, %v375
    %v377 = vand.u32 %v376, 4294901760
    %378 = vmatpush1.msra.mxu0 %v377
    %379 = vmatprep.subr.mxu0 0.0
    %v380 = vand.u32 %v118, 4294901760
    %v381 = vsub.f32 %v118, %v380
    %v382 = vand.u32 %v381, 4294901760
    %v383 = vsub.f32 %v381, %v382
    %v384 = vand.u32 %v383, 4294901760
    %385 = vmatpush1.msra.mxu0 %v384
    %386 = vmatprep.subr.mxu0 0.0
    %v387 = vand.u32 %v117, 4294901760
    %v388 = vsub.f32 %v117, %v387
    %v389 = vand.u32 %v388, 4294901760
    %v390 = vsub.f32 %v388, %v389
    %v391 = vand.u32 %v390, 4294901760
    %392 = vmatpush1.msra.mxu0 %v391
    %393 = vmatprep.subr.mxu0 0.0
    %v394 = vand.u32 %v116, 4294901760
    %v395 = vsub.f32 %v116, %v394
    %v396 = vand.u32 %v395, 4294901760
    %v397 = vsub.f32 %v395, %v396
    %v398 = vand.u32 %v397, 4294901760
    %399 = vmatpush1.msra.mxu0 %v398
    %400 = vmatprep.subr.mxu0 0.0
    %v401 = vand.u32 %v115, 4294901760
    %v402 = vsub.f32 %v115, %v401
    %v403 = vand.u32 %v402, 4294901760
    %v404 = vsub.f32 %v402, %v403
    %v405 = vand.u32 %v404, 4294901760
    %406 = vmatpush1.msra.mxu0 %v405
    %407 = vmatprep.subr.mxu0 0.0
    %v408 = vand.u32 %v114, 4294901760
    %v409 = vsub.f32 %v114, %v408
    %v410 = vand.u32 %v409, 4294901760
    %v411 = vsub.f32 %v409, %v410
    %v412 = vand.u32 %v411, 4294901760
    %413 = vmatpush1.msra.mxu0 %v412
    %414 = vmatprep.subr.mxu0 0.0
    %v415 = vand.u32 %v113, 4294901760
    %v416 = vsub.f32 %v113, %v415
    %v417 = vand.u32 %v416, 4294901760
    %v418 = vsub.f32 %v416, %v417
    %v419 = vand.u32 %v418, 4294901760
    %420 = vmatpush1.msra.mxu0 %v419
    %421 = vmatprep.subr.mxu0 0.0
    %v422 = vand.u32 %v112, 4294901760
    %v423 = vsub.f32 %v112, %v422
    %v424 = vand.u32 %v423, 4294901760
    %v425 = vsub.f32 %v423, %v424
    %v426 = vand.u32 %v425, 4294901760
    %427 = vmatpush1.msra.mxu0 %v426
    %428 = vmatprep.subr.mxu0 0.0
    %429 = vmatpush2.msra.mxu0 0.0
    %430 = vmatprep.subr.mxu0 0.0
    %431 = vmatpush2.msra.mxu0 0.0
    %432 = vmatprep.subr.mxu0 0.0
    %433 = vmatpush2.msra.mxu0 0.0
    %434 = vmatprep.subr.mxu0 0.0
    %435 = vmatpush2.msra.mxu0 0.0
    %436 = vmatprep.subr.mxu0 0.0
    %437 = vmatpush2.msra.mxu0 0.0
    %438 = vmatprep.subr.mxu0 0.0
    %439 = vmatpush2.msra.mxu0 0.0
    %440 = vmatprep.subr.mxu0 0.0
    %441 = vmatpush2.msra.mxu0 0.0
    %442 = vmatprep.subr.mxu0 0.0
    %443 = vmatpush2.msra.mxu0 0.0
    %444 = vmatprep.subr.mxu0 0.0
    %445 = vmatpush2.msra.mxu0 0.0
    %446 = vmatprep.subr.mxu0 0.0
    %447 = vmatpush2.msra.mxu0 0.0
    %448 = vmatprep.subr.mxu0 0.0
    %449 = vmatpush2.msra.mxu0 0.0
    %450 = vmatprep.subr.mxu0 0.0
    %451 = vmatpush2.msra.mxu0 0.0
    %452 = vmatprep.subr.mxu0 0.0
    %453 = vmatpush2.msra.mxu0 0.0
    %454 = vmatprep.subr.mxu0 0.0
    %455 = vmatpush2.msra.mxu0 0.0
    %456 = vmatprep.subr.mxu0 0.0
    %457 = vmatpush2.msra.mxu0 0.0
    %458 = vmatprep.subr.mxu0 0.0
    %459 = vmatpush2.msra.mxu0 0.0
    %460 = vmatprep.mubr.f32.mxu0 0.0
    %v461 = vand.u32 %v180, 4294901760
    %462 = vmatmul.mubr.f32.gmra.mxu0 %v461
    %v463 = vpop.f32.mrf.mxu0
    %v464 = vadd.f32 %v273, %v463
    %v465 = vpop.f32.mrf.mxu0
    %466 = vmatprep.mubr.f32.mxu0 0.0
    %v467 = vand.u32 %v181, 4294901760
    %468 = vmatmul.mubr.f32.gmra.mxu0 %v467
    %v469 = vpop.f32.mrf.mxu0
    %v470 = vadd.f32 %v283, %v469
    %v471 = vpop.f32.mrf.mxu0
    %472 = vmatprep.mubr.f32.mxu0 0.0
    %v473 = vand.u32 %v182, 4294901760
    %474 = vmatmul.mubr.f32.gmra.mxu0 %v473
    %v475 = vpop.f32.mrf.mxu0
    %v476 = vadd.f32 %v293, %v475
    %v477 = vpop.f32.mrf.mxu0
    %478 = vmatprep.mubr.f32.mxu0 0.0
    %v479 = vand.u32 %v183, 4294901760
    %480 = vmatmul.mubr.f32.gmra.mxu0 %v479
    %v481 = vpop.f32.mrf.mxu0
    %v482 = vadd.f32 %v303, %v481
    %v483 = vpop.f32.mrf.mxu0
    %484 = vmatprep.mubr.f32.mxu0 0.0
    %v485 = vand.u32 %v184, 4294901760
    %486 = vmatmul.mubr.f32.gmra.mxu0 %v485
    %v487 = vpop.f32.mrf.mxu0
    %v488 = vadd.f32 %v313, %v487
    %v489 = vpop.f32.mrf.mxu0
    %490 = vdwg.mxu0
    %491 = vmatprep.subr.mxu0 0.0
    %v492 = vand.u32 %v127, 4294901760
    %v493 = vsub.f32 %v127, %v492
    %494 = vmatpush1.msra.mxu0 %v493
    %495 = vmatprep.subr.mxu0 0.0
    %v496 = vand.u32 %v126, 4294901760
    %v497 = vsub.f32 %v126, %v496
    %498 = vmatpush1.msra.mxu0 %v497
    %499 = vmatprep.subr.mxu0 0.0
    %v500 = vand.u32 %v125, 4294901760
    %v501 = vsub.f32 %v125, %v500
    %502 = vmatpush1.msra.mxu0 %v501
    %503 = vmatprep.subr.mxu0 0.0
    %v504 = vand.u32 %v124, 4294901760
    %v505 = vsub.f32 %v124, %v504
    %506 = vmatpush1.msra.mxu0 %v505
    %507 = vmatprep.subr.mxu0 0.0
    %v508 = vand.u32 %v123, 4294901760
    %v509 = vsub.f32 %v123, %v508
    %510 = vmatpush1.msra.mxu0 %v509
    %511 = vmatprep.subr.mxu0 0.0
    %v512 = vand.u32 %v122, 4294901760
    %v513 = vsub.f32 %v122, %v512
    %514 = vmatpush1.msra.mxu0 %v513
    %515 = vmatprep.subr.mxu0 0.0
    %v516 = vand.u32 %v121, 4294901760
    %v517 = vsub.f32 %v121, %v516
    %518 = vmatpush1.msra.mxu0 %v517
    %519 = vmatprep.subr.mxu0 0.0
    %v520 = vand.u32 %v120, 4294901760
    %v521 = vsub.f32 %v120, %v520
    %522 = vmatpush1.msra.mxu0 %v521
    %523 = vmatprep.subr.mxu0 0.0
    %v524 = vand.u32 %v119, 4294901760
    %v525 = vsub.f32 %v119, %v524
    %526 = vmatpush1.msra.mxu0 %v525
    %527 = vmatprep.subr.mxu0 0.0
    %v528 = vand.u32 %v118, 4294901760
    %v529 = vsub.f32 %v118, %v528
    %530 = vmatpush1.msra.mxu0 %v529
    %531 = vmatprep.subr.mxu0 0.0
    %v532 = vand.u32 %v117, 4294901760
    %v533 = vsub.f32 %v117, %v532
    %534 = vmatpush1.msra.mxu0 %v533
    %535 = vmatprep.subr.mxu0 0.0
    %v536 = vand.u32 %v116, 4294901760
    %v537 = vsub.f32 %v116, %v536
    %538 = vmatpush1.msra.mxu0 %v537
    %539 = vmatprep.subr.mxu0 0.0
    %v540 = vand.u32 %v115, 4294901760
    %v541 = vsub.f32 %v115, %v540
    %542 = vmatpush1.msra.mxu0 %v541
    %543 = vmatprep.subr.mxu0 0.0
    %v544 = vand.u32 %v114, 4294901760
    %v545 = vsub.f32 %v114, %v544
    %546 = vmatpush1.msra.mxu0 %v545
    %547 = vmatprep.subr.mxu0 0.0
    %v548 = vand.u32 %v113, 4294901760
    %v549 = vsub.f32 %v113, %v548
    %550 = vmatpush1.msra.mxu0 %v549
    %551 = vmatprep.subr.mxu0 0.0
    %v552 = vand.u32 %v112, 4294901760
    %v553 = vsub.f32 %v112, %v552
    %554 = vmatpush1.msra.mxu0 %v553
    %555 = vmatprep.subr.mxu0 0.0
    %556 = vmatpush2.msra.mxu0 0.0
    %557 = vmatprep.subr.mxu0 0.0
    %558 = vmatpush2.msra.mxu0 0.0
    %559 = vmatprep.subr.mxu0 0.0
    %560 = vmatpush2.msra.mxu0 0.0
    %561 = vmatprep.subr.mxu0 0.0
    %562 = vmatpush2.msra.mxu0 0.0
    %563 = vmatprep.subr.mxu0 0.0
    %564 = vmatpush2.msra.mxu0 0.0
    %565 = vmatprep.subr.mxu0 0.0
    %566 = vmatpush2.msra.mxu0 0.0
    %567 = vmatprep.subr.mxu0 0.0
    %568 = vmatpush2.msra.mxu0 0.0
    %569 = vmatprep.subr.mxu0 0.0
    %570 = vmatpush2.msra.mxu0 0.0
    %571 = vmatprep.subr.mxu0 0.0
    %572 = vmatpush2.msra.mxu0 0.0
    %573 = vmatprep.subr.mxu0 0.0
    %574 = vmatpush2.msra.mxu0 0.0
    %575 = vmatprep.subr.mxu0 0.0
    %576 = vmatpush2.msra.mxu0 0.0
    %577 = vmatprep.subr.mxu0 0.0
    %578 = vmatpush2.msra.mxu0 0.0
    %579 = vmatprep.subr.mxu0 0.0
    %580 = vmatpush2.msra.mxu0 0.0
    %581 = vmatprep.subr.mxu0 0.0
    %582 = vmatpush2.msra.mxu0 0.0
    %583 = vmatprep.subr.mxu0 0.0
    %584 = vmatpush2.msra.mxu0 0.0
    %585 = vmatprep.subr.mxu0 0.0
    %586 = vmatpush2.msra.mxu0 0.0
    %587 = vmatprep.mubr.f32.mxu0 0.0
    %v588 = vand.u32 %v180, 4294901760
    %v589 = vsub.f32 %v180, %v588
    %590 = vmatmul.mubr.f32.gmra.mxu0 %v589
    %v591 = vpop.f32.mrf.mxu0
    %v592 = vadd.f32 %v464, %v591
    %v593 = vpop.f32.mrf.mxu0
    %594 = vmatprep.mubr.f32.mxu0 0.0
    %v595 = vand.u32 %v181, 4294901760
    %v596 = vsub.f32 %v181, %v595
    %597 = vmatmul.mubr.f32.gmra.mxu0 %v596
    %v598 = vpop.f32.mrf.mxu0
    %v599 = vadd.f32 %v470, %v598
    %v600 = vpop.f32.mrf.mxu0
    %601 = vmatprep.mubr.f32.mxu0 0.0
    %v602 = vand.u32 %v182, 4294901760
    %v603 = vsub.f32 %v182, %v602
    %604 = vmatmul.mubr.f32.gmra.mxu0 %v603
    %v605 = vpop.f32.mrf.mxu0
    %v606 = vadd.f32 %v476, %v605
    %v607 = vpop.f32.mrf.mxu0
    %608 = vmatprep.mubr.f32.mxu0 0.0
    %v609 = vand.u32 %v183, 4294901760
    %v610 = vsub.f32 %v183, %v609
    %611 = vmatmul.mubr.f32.gmra.mxu0 %v610
    %v612 = vpop.f32.mrf.mxu0
    %v613 = vadd.f32 %v482, %v612
    %v614 = vpop.f32.mrf.mxu0
    %615 = vmatprep.mubr.f32.mxu0 0.0
    %v616 = vand.u32 %v184, 4294901760
    %v617 = vsub.f32 %v184, %v616
    %618 = vmatmul.mubr.f32.gmra.mxu0 %v617
    %v619 = vpop.f32.mrf.mxu0
    %v620 = vadd.f32 %v488, %v619
    %v621 = vpop.f32.mrf.mxu0
    %622 = vdwg.mxu0
    %623 = vmatprep.subr.mxu0 0.0
    %v624 = vand.u32 %v127, 4294901760
    %625 = vmatpush1.msra.mxu0 %v624
    %626 = vmatprep.subr.mxu0 0.0
    %v627 = vand.u32 %v126, 4294901760
    %628 = vmatpush1.msra.mxu0 %v627
    %629 = vmatprep.subr.mxu0 0.0
    %v630 = vand.u32 %v125, 4294901760
    %631 = vmatpush1.msra.mxu0 %v630
    %632 = vmatprep.subr.mxu0 0.0
    %v633 = vand.u32 %v124, 4294901760
    %634 = vmatpush1.msra.mxu0 %v633
    %635 = vmatprep.subr.mxu0 0.0
    %v636 = vand.u32 %v123, 4294901760
    %637 = vmatpush1.msra.mxu0 %v636
    %638 = vmatprep.subr.mxu0 0.0
    %v639 = vand.u32 %v122, 4294901760
    %640 = vmatpush1.msra.mxu0 %v639
    %641 = vmatprep.subr.mxu0 0.0
    %v642 = vand.u32 %v121, 4294901760
    %643 = vmatpush1.msra.mxu0 %v642
    %644 = vmatprep.subr.mxu0 0.0
    %v645 = vand.u32 %v120, 4294901760
    %646 = vmatpush1.msra.mxu0 %v645
    %647 = vmatprep.subr.mxu0 0.0
    %v648 = vand.u32 %v119, 4294901760
    %649 = vmatpush1.msra.mxu0 %v648
    %650 = vmatprep.subr.mxu0 0.0
    %v651 = vand.u32 %v118, 4294901760
    %652 = vmatpush1.msra.mxu0 %v651
    %653 = vmatprep.subr.mxu0 0.0
    %v654 = vand.u32 %v117, 4294901760
    %655 = vmatpush1.msra.mxu0 %v654
    %656 = vmatprep.subr.mxu0 0.0
    %v657 = vand.u32 %v116, 4294901760
    %658 = vmatpush1.msra.mxu0 %v657
    %659 = vmatprep.subr.mxu0 0.0
    %v660 = vand.u32 %v115, 4294901760
    %661 = vmatpush1.msra.mxu0 %v660
    %662 = vmatprep.subr.mxu0 0.0
    %v663 = vand.u32 %v114, 4294901760
    %664 = vmatpush1.msra.mxu0 %v663
    %665 = vmatprep.subr.mxu0 0.0
    %v666 = vand.u32 %v113, 4294901760
    %667 = vmatpush1.msra.mxu0 %v666
    %668 = vmatprep.subr.mxu0 0.0
    %v669 = vand.u32 %v112, 4294901760
    %670 = vmatpush1.msra.mxu0 %v669
    %671 = vmatprep.subr.mxu0 0.0
    %672 = vmatpush2.msra.mxu0 0.0
    %673 = vmatprep.subr.mxu0 0.0
    %674 = vmatpush2.msra.mxu0 0.0
    %675 = vmatprep.subr.mxu0 0.0
    %676 = vmatpush2.msra.mxu0 0.0
    %677 = vmatprep.subr.mxu0 0.0
    %678 = vmatpush2.msra.mxu0 0.0
    %679 = vmatprep.subr.mxu0 0.0
    %680 = vmatpush2.msra.mxu0 0.0
    %681 = vmatprep.subr.mxu0 0.0
    %682 = vmatpush2.msra.mxu0 0.0
    %683 = vmatprep.subr.mxu0 0.0
    %684 = vmatpush2.msra.mxu0 0.0
    %685 = vmatprep.subr.mxu0 0.0
    %686 = vmatpush2.msra.mxu0 0.0
    %687 = vmatprep.subr.mxu0 0.0
    %688 = vmatpush2.msra.mxu0 0.0
    %689 = vmatprep.subr.mxu0 0.0
    %690 = vmatpush2.msra.mxu0 0.0
    %691 = vmatprep.subr.mxu0 0.0
    %692 = vmatpush2.msra.mxu0 0.0
    %693 = vmatprep.subr.mxu0 0.0
    %694 = vmatpush2.msra.mxu0 0.0
    %695 = vmatprep.subr.mxu0 0.0
    %696 = vmatpush2.msra.mxu0 0.0
    %697 = vmatprep.subr.mxu0 0.0
    %698 = vmatpush2.msra.mxu0 0.0
    %699 = vmatprep.subr.mxu0 0.0
    %700 = vmatpush2.msra.mxu0 0.0
    %701 = vmatprep.subr.mxu0 0.0
    %702 = vmatpush2.msra.mxu0 0.0
    %703 = vmatprep.mubr.f32.mxu0 0.0
    %v704 = vand.u32 %v180, 4294901760
    %v705 = vsub.f32 %v180, %v704
    %v706 = vand.u32 %v705, 4294901760
    %707 = vmatmul.mubr.f32.gmra.mxu0 %v706
    %v708 = vpop.f32.mrf.mxu0
    %v709 = vadd.f32 %v592, %v708
    %v710 = vpop.f32.mrf.mxu0
    %711 = vmatprep.mubr.f32.mxu0 0.0
    %v712 = vand.u32 %v181, 4294901760
    %v713 = vsub.f32 %v181, %v712
    %v714 = vand.u32 %v713, 4294901760
    %715 = vmatmul.mubr.f32.gmra.mxu0 %v714
    %v716 = vpop.f32.mrf.mxu0
    %v717 = vadd.f32 %v599, %v716
    %v718 = vpop.f32.mrf.mxu0
    %719 = vmatprep.mubr.f32.mxu0 0.0
    %v720 = vand.u32 %v182, 4294901760
    %v721 = vsub.f32 %v182, %v720
    %v722 = vand.u32 %v721, 4294901760
    %723 = vmatmul.mubr.f32.gmra.mxu0 %v722
    %v724 = vpop.f32.mrf.mxu0
    %v725 = vadd.f32 %v606, %v724
    %v726 = vpop.f32.mrf.mxu0
    %727 = vmatprep.mubr.f32.mxu0 0.0
    %v728 = vand.u32 %v183, 4294901760
    %v729 = vsub.f32 %v183, %v728
    %v730 = vand.u32 %v729, 4294901760
    %731 = vmatmul.mubr.f32.gmra.mxu0 %v730
    %v732 = vpop.f32.mrf.mxu0
    %v733 = vadd.f32 %v613, %v732
    %v734 = vpop.f32.mrf.mxu0
    %735 = vmatprep.mubr.f32.mxu0 0.0
    %v736 = vand.u32 %v184, 4294901760
    %v737 = vsub.f32 %v184, %v736
    %v738 = vand.u32 %v737, 4294901760
    %739 = vmatmul.mubr.f32.gmra.mxu0 %v738
    %v740 = vpop.f32.mrf.mxu0
    %v741 = vadd.f32 %v620, %v740
    %v742 = vpop.f32.mrf.mxu0
    %743 = vdwg.mxu0
    %744 = vmatprep.subr.mxu0 0.0
    %v745 = vand.u32 %v127, 4294901760
    %v746 = vsub.f32 %v127, %v745
    %v747 = vand.u32 %v746, 4294901760
    %748 = vmatpush1.msra.mxu0 %v747
    %749 = vmatprep.subr.mxu0 0.0
    %v750 = vand.u32 %v126, 4294901760
    %v751 = vsub.f32 %v126, %v750
    %v752 = vand.u32 %v751, 4294901760
    %753 = vmatpush1.msra.mxu0 %v752
    %754 = vmatprep.subr.mxu0 0.0
    %v755 = vand.u32 %v125, 4294901760
    %v756 = vsub.f32 %v125, %v755
    %v757 = vand.u32 %v756, 4294901760
    %758 = vmatpush1.msra.mxu0 %v757
    %759 = vmatprep.subr.mxu0 0.0
    %v760 = vand.u32 %v124, 4294901760
    %v761 = vsub.f32 %v124, %v760
    %v762 = vand.u32 %v761, 4294901760
    %763 = vmatpush1.msra.mxu0 %v762
    %764 = vmatprep.subr.mxu0 0.0
    %v765 = vand.u32 %v123, 4294901760
    %v766 = vsub.f32 %v123, %v765
    %v767 = vand.u32 %v766, 4294901760
    %768 = vmatpush1.msra.mxu0 %v767
    %769 = vmatprep.subr.mxu0 0.0
    %v770 = vand.u32 %v122, 4294901760
    %v771 = vsub.f32 %v122, %v770
    %v772 = vand.u32 %v771, 4294901760
    %773 = vmatpush1.msra.mxu0 %v772
    %774 = vmatprep.subr.mxu0 0.0
    %v775 = vand.u32 %v121, 4294901760
    %v776 = vsub.f32 %v121, %v775
    %v777 = vand.u32 %v776, 4294901760
    %778 = vmatpush1.msra.mxu0 %v777
    %779 = vmatprep.subr.mxu0 0.0
    %v780 = vand.u32 %v120, 4294901760
    %v781 = vsub.f32 %v120, %v780
    %v782 = vand.u32 %v781, 4294901760
    %783 = vmatpush1.msra.mxu0 %v782
    %784 = vmatprep.subr.mxu0 0.0
    %v785 = vand.u32 %v119, 4294901760
    %v786 = vsub.f32 %v119, %v785
    %v787 = vand.u32 %v786, 4294901760
    %788 = vmatpush1.msra.mxu0 %v787
    %789 = vmatprep.subr.mxu0 0.0
    %v790 = vand.u32 %v118, 4294901760
    %v791 = vsub.f32 %v118, %v790
    %v792 = vand.u32 %v791, 4294901760
    %793 = vmatpush1.msra.mxu0 %v792
    %794 = vmatprep.subr.mxu0 0.0
    %v795 = vand.u32 %v117, 4294901760
    %v796 = vsub.f32 %v117, %v795
    %v797 = vand.u32 %v796, 4294901760
    %798 = vmatpush1.msra.mxu0 %v797
    %799 = vmatprep.subr.mxu0 0.0
    %v800 = vand.u32 %v116, 4294901760
    %v801 = vsub.f32 %v116, %v800
    %v802 = vand.u32 %v801, 4294901760
    %803 = vmatpush1.msra.mxu0 %v802
    %804 = vmatprep.subr.mxu0 0.0
    %v805 = vand.u32 %v115, 4294901760
    %v806 = vsub.f32 %v115, %v805
    %v807 = vand.u32 %v806, 4294901760
    %808 = vmatpush1.msra.mxu0 %v807
    %809 = vmatprep.subr.mxu0 0.0
    %v810 = vand.u32 %v114, 4294901760
    %v811 = vsub.f32 %v114, %v810
    %v812 = vand.u32 %v811, 4294901760
    %813 = vmatpush1.msra.mxu0 %v812
    %814 = vmatprep.subr.mxu0 0.0
    %v815 = vand.u32 %v113, 4294901760
    %v816 = vsub.f32 %v113, %v815
    %v817 = vand.u32 %v816, 4294901760
    %818 = vmatpush1.msra.mxu0 %v817
    %819 = vmatprep.subr.mxu0 0.0
    %v820 = vand.u32 %v112, 4294901760
    %v821 = vsub.f32 %v112, %v820
    %v822 = vand.u32 %v821, 4294901760
    %823 = vmatpush1.msra.mxu0 %v822
    %824 = vmatprep.subr.mxu0 0.0
    %825 = vmatpush2.msra.mxu0 0.0
    %826 = vmatprep.subr.mxu0 0.0
    %827 = vmatpush2.msra.mxu0 0.0
    %828 = vmatprep.subr.mxu0 0.0
    %829 = vmatpush2.msra.mxu0 0.0
    %830 = vmatprep.subr.mxu0 0.0
    %831 = vmatpush2.msra.mxu0 0.0
    %832 = vmatprep.subr.mxu0 0.0
    %833 = vmatpush2.msra.mxu0 0.0
    %834 = vmatprep.subr.mxu0 0.0
    %835 = vmatpush2.msra.mxu0 0.0
    %836 = vmatprep.subr.mxu0 0.0
    %837 = vmatpush2.msra.mxu0 0.0
    %838 = vmatprep.subr.mxu0 0.0
    %839 = vmatpush2.msra.mxu0 0.0
    %840 = vmatprep.subr.mxu0 0.0
    %841 = vmatpush2.msra.mxu0 0.0
    %842 = vmatprep.subr.mxu0 0.0
    %843 = vmatpush2.msra.mxu0 0.0
    %844 = vmatprep.subr.mxu0 0.0
    %845 = vmatpush2.msra.mxu0 0.0
    %846 = vmatprep.subr.mxu0 0.0
    %847 = vmatpush2.msra.mxu0 0.0
    %848 = vmatprep.subr.mxu0 0.0
    %849 = vmatpush2.msra.mxu0 0.0
    %850 = vmatprep.subr.mxu0 0.0
    %851 = vmatpush2.msra.mxu0 0.0
    %852 = vmatprep.subr.mxu0 0.0
    %853 = vmatpush2.msra.mxu0 0.0
    %854 = vmatprep.subr.mxu0 0.0
    %855 = vmatpush2.msra.mxu0 0.0
    %856 = vmatprep.mubr.f32.mxu0 0.0
    %v857 = vand.u32 %v180, 4294901760
    %858 = vmatmul.mubr.f32.gmra.mxu0 %v857
    %v859 = vpop.f32.mrf.mxu0
    %v860 = vadd.f32 %v709, %v859
    %v861 = vpop.f32.mrf.mxu0
    %862 = vmatprep.mubr.f32.mxu0 0.0
    %v863 = vand.u32 %v181, 4294901760
    %864 = vmatmul.mubr.f32.gmra.mxu0 %v863
    %v865 = vpop.f32.mrf.mxu0
    %v866 = vadd.f32 %v717, %v865
    %v867 = vpop.f32.mrf.mxu0
    %868 = vmatprep.mubr.f32.mxu0 0.0
    %v869 = vand.u32 %v182, 4294901760
    %870 = vmatmul.mubr.f32.gmra.mxu0 %v869
    %v871 = vpop.f32.mrf.mxu0
    %v872 = vadd.f32 %v725, %v871
    %v873 = vpop.f32.mrf.mxu0
    %874 = vmatprep.mubr.f32.mxu0 0.0
    %v875 = vand.u32 %v183, 4294901760
    %876 = vmatmul.mubr.f32.gmra.mxu0 %v875
    %v877 = vpop.f32.mrf.mxu0
    %v878 = vadd.f32 %v733, %v877
    %v879 = vpop.f32.mrf.mxu0
    %880 = vmatprep.mubr.f32.mxu0 0.0
    %v881 = vand.u32 %v184, 4294901760
    %882 = vmatmul.mubr.f32.gmra.mxu0 %v881
    %v883 = vpop.f32.mrf.mxu0
    %v884 = vadd.f32 %v741, %v883
    %v885 = vpop.f32.mrf.mxu0
    %886 = vdwg.mxu0
    %887 = vmatprep.subr.mxu0 0.0
    %v888 = vand.u32 %v127, 4294901760
    %889 = vmatpush1.msra.mxu0 %v888
    %890 = vmatprep.subr.mxu0 0.0
    %v891 = vand.u32 %v126, 4294901760
    %892 = vmatpush1.msra.mxu0 %v891
    %893 = vmatprep.subr.mxu0 0.0
    %v894 = vand.u32 %v125, 4294901760
    %895 = vmatpush1.msra.mxu0 %v894
    %896 = vmatprep.subr.mxu0 0.0
    %v897 = vand.u32 %v124, 4294901760
    %898 = vmatpush1.msra.mxu0 %v897
    %899 = vmatprep.subr.mxu0 0.0
    %v900 = vand.u32 %v123, 4294901760
    %901 = vmatpush1.msra.mxu0 %v900
    %902 = vmatprep.subr.mxu0 0.0
    %v903 = vand.u32 %v122, 4294901760
    %904 = vmatpush1.msra.mxu0 %v903
    %905 = vmatprep.subr.mxu0 0.0
    %v906 = vand.u32 %v121, 4294901760
    %907 = vmatpush1.msra.mxu0 %v906
    %908 = vmatprep.subr.mxu0 0.0
    %v909 = vand.u32 %v120, 4294901760
    %910 = vmatpush1.msra.mxu0 %v909
    %911 = vmatprep.subr.mxu0 0.0
    %v912 = vand.u32 %v119, 4294901760
    %913 = vmatpush1.msra.mxu0 %v912
    %914 = vmatprep.subr.mxu0 0.0
    %v915 = vand.u32 %v118, 4294901760
    %916 = vmatpush1.msra.mxu0 %v915
    %917 = vmatprep.subr.mxu0 0.0
    %v918 = vand.u32 %v117, 4294901760
    %919 = vmatpush1.msra.mxu0 %v918
    %920 = vmatprep.subr.mxu0 0.0
    %v921 = vand.u32 %v116, 4294901760
    %922 = vmatpush1.msra.mxu0 %v921
    %923 = vmatprep.subr.mxu0 0.0
    %v924 = vand.u32 %v115, 4294901760
    %925 = vmatpush1.msra.mxu0 %v924
    %926 = vmatprep.subr.mxu0 0.0
    %v927 = vand.u32 %v114, 4294901760
    %928 = vmatpush1.msra.mxu0 %v927
    %929 = vmatprep.subr.mxu0 0.0
    %v930 = vand.u32 %v113, 4294901760
    %931 = vmatpush1.msra.mxu0 %v930
    %932 = vmatprep.subr.mxu0 0.0
    %v933 = vand.u32 %v112, 4294901760
    %934 = vmatpush1.msra.mxu0 %v933
    %935 = vmatprep.subr.mxu0 0.0
    %936 = vmatpush2.msra.mxu0 0.0
    %937 = vmatprep.subr.mxu0 0.0
    %938 = vmatpush2.msra.mxu0 0.0
    %939 = vmatprep.subr.mxu0 0.0
    %940 = vmatpush2.msra.mxu0 0.0
    %941 = vmatprep.subr.mxu0 0.0
    %942 = vmatpush2.msra.mxu0 0.0
    %943 = vmatprep.subr.mxu0 0.0
    %944 = vmatpush2.msra.mxu0 0.0
    %945 = vmatprep.subr.mxu0 0.0
    %946 = vmatpush2.msra.mxu0 0.0
    %947 = vmatprep.subr.mxu0 0.0
    %948 = vmatpush2.msra.mxu0 0.0
    %949 = vmatprep.subr.mxu0 0.0
    %950 = vmatpush2.msra.mxu0 0.0
    %951 = vmatprep.subr.mxu0 0.0
    %952 = vmatpush2.msra.mxu0 0.0
    %953 = vmatprep.subr.mxu0 0.0
    %954 = vmatpush2.msra.mxu0 0.0
    %955 = vmatprep.subr.mxu0 0.0
    %956 = vmatpush2.msra.mxu0 0.0
    %957 = vmatprep.subr.mxu0 0.0
    %958 = vmatpush2.msra.mxu0 0.0
    %959 = vmatprep.subr.mxu0 0.0
    %960 = vmatpush2.msra.mxu0 0.0
    %961 = vmatprep.subr.mxu0 0.0
    %962 = vmatpush2.msra.mxu0 0.0
    %963 = vmatprep.subr.mxu0 0.0
    %964 = vmatpush2.msra.mxu0 0.0
    %965 = vmatprep.subr.mxu0 0.0
    %966 = vmatpush2.msra.mxu0 0.0
    %967 = vmatprep.mubr.f32.mxu0 0.0
    %v968 = vand.u32 %v180, 4294901760
    %969 = vmatmul.mubr.f32.gmra.mxu0 %v968
    %v970 = vpop.f32.mrf.mxu0
    %v971 = vadd.f32 %v860, %v970
    %v972 = vpop.f32.mrf.mxu0
    %973 = vmatprep.mubr.f32.mxu0 0.0
    %v974 = vand.u32 %v181, 4294901760
    %975 = vmatmul.mubr.f32.gmra.mxu0 %v974
    %v976 = vpop.f32.mrf.mxu0
    %v977 = vadd.f32 %v866, %v976
    %v978 = vpop.f32.mrf.mxu0
    %979 = vmatprep.mubr.f32.mxu0 0.0
    %v980 = vand.u32 %v182, 4294901760
    %981 = vmatmul.mubr.f32.gmra.mxu0 %v980
    %v982 = vpop.f32.mrf.mxu0
    %v983 = vadd.f32 %v872, %v982
    %v984 = vpop.f32.mrf.mxu0
    %985 = vmatprep.mubr.f32.mxu0 0.0
    %v986 = vand.u32 %v183, 4294901760
    %987 = vmatmul.mubr.f32.gmra.mxu0 %v986
    %v988 = vpop.f32.mrf.mxu0
    %v989 = vadd.f32 %v878, %v988
    %v990 = vpop.f32.mrf.mxu0
    %991 = vmatprep.mubr.f32.mxu0 0.0
    %v992 = vand.u32 %v184, 4294901760
    %993 = vmatmul.mubr.f32.gmra.mxu0 %v992
    %v994 = vpop.f32.mrf.mxu0
    %v995 = vadd.f32 %v884, %v994
    %v996 = vpop.f32.mrf.mxu0
    %997 = vdwg.mxu0
    %v998 = vld [vmem:[#allocation7] sm:$0xff]
    %v999 = vld [vmem:[#allocation7 + $0x8] sm:$0xff]
    %v1000 = vld [vmem:[#allocation7 + $0x10] sm:$0xff]
    %v1001 = vld [vmem:[#allocation7 + $0x18] sm:$0xff]
    %v1002 = vld [vmem:[#allocation7 + $0x20] sm:$0xff]
    %1003 = vmatprep.subr.mxu0 0.0
    %v1004 = vand.u32 %v179, 4294901760
    %1005 = vmatpush1.msra.mxu0 %v1004
    %1006 = vmatprep.subr.mxu0 0.0
    %v1007 = vand.u32 %v178, 4294901760
    %1008 = vmatpush1.msra.mxu0 %v1007
    %1009 = vmatprep.subr.mxu0 0.0
    %v1010 = vand.u32 %v177, 4294901760
    %1011 = vmatpush1.msra.mxu0 %v1010
    %1012 = vmatprep.subr.mxu0 0.0
    %v1013 = vand.u32 %v176, 4294901760
    %1014 = vmatpush1.msra.mxu0 %v1013
    %1015 = vmatprep.subr.mxu0 0.0
    %v1016 = vand.u32 %v175, 4294901760
    %1017 = vmatpush1.msra.mxu0 %v1016
    %1018 = vmatprep.subr.mxu0 0.0
    %v1019 = vand.u32 %v174, 4294901760
    %1020 = vmatpush1.msra.mxu0 %v1019
    %1021 = vmatprep.subr.mxu0 0.0
    %v1022 = vand.u32 %v173, 4294901760
    %1023 = vmatpush1.msra.mxu0 %v1022
    %1024 = vmatprep.subr.mxu0 0.0
    %v1025 = vand.u32 %v172, 4294901760
    %1026 = vmatpush1.msra.mxu0 %v1025
    %1027 = vmatprep.subr.mxu0 0.0
    %v1028 = vand.u32 %v171, 4294901760
    %1029 = vmatpush1.msra.mxu0 %v1028
    %1030 = vmatprep.subr.mxu0 0.0
    %v1031 = vand.u32 %v170, 4294901760
    %1032 = vmatpush1.msra.mxu0 %v1031
    %1033 = vmatprep.subr.mxu0 0.0
    %v1034 = vand.u32 %v169, 4294901760
    %1035 = vmatpush1.msra.mxu0 %v1034
    %1036 = vmatprep.subr.mxu0 0.0
    %v1037 = vand.u32 %v168, 4294901760
    %1038 = vmatpush1.msra.mxu0 %v1037
    %1039 = vmatprep.subr.mxu0 0.0
    %v1040 = vand.u32 %v167, 4294901760
    %1041 = vmatpush1.msra.mxu0 %v1040
    %1042 = vmatprep.subr.mxu0 0.0
    %v1043 = vand.u32 %v166, 4294901760
    %1044 = vmatpush1.msra.mxu0 %v1043
    %1045 = vmatprep.subr.mxu0 0.0
    %v1046 = vand.u32 %v165, 4294901760
    %1047 = vmatpush1.msra.mxu0 %v1046
    %1048 = vmatprep.subr.mxu0 0.0
    %v1049 = vand.u32 %v164, 4294901760
    %1050 = vmatpush1.msra.mxu0 %v1049
    %1051 = vmatprep.subr.mxu0 0.0
    %1052 = vmatpush2.msra.mxu0 0.0
    %1053 = vmatprep.subr.mxu0 0.0
    %1054 = vmatpush2.msra.mxu0 0.0
    %1055 = vmatprep.subr.mxu0 0.0
    %1056 = vmatpush2.msra.mxu0 0.0
    %1057 = vmatprep.subr.mxu0 0.0
    %1058 = vmatpush2.msra.mxu0 0.0
    %1059 = vmatprep.subr.mxu0 0.0
    %1060 = vmatpush2.msra.mxu0 0.0
    %1061 = vmatprep.subr.mxu0 0.0
    %1062 = vmatpush2.msra.mxu0 0.0
    %1063 = vmatprep.subr.mxu0 0.0
    %1064 = vmatpush2.msra.mxu0 0.0
    %1065 = vmatprep.subr.mxu0 0.0
    %1066 = vmatpush2.msra.mxu0 0.0
    %1067 = vmatprep.subr.mxu0 0.0
    %1068 = vmatpush2.msra.mxu0 0.0
    %1069 = vmatprep.subr.mxu0 0.0
    %1070 = vmatpush2.msra.mxu0 0.0
    %1071 = vmatprep.subr.mxu0 0.0
    %1072 = vmatpush2.msra.mxu0 0.0
    %1073 = vmatprep.subr.mxu0 0.0
    %1074 = vmatpush2.msra.mxu0 0.0
    %1075 = vmatprep.subr.mxu0 0.0
    %1076 = vmatpush2.msra.mxu0 0.0
    %1077 = vmatprep.subr.mxu0 0.0
    %1078 = vmatpush2.msra.mxu0 0.0
    %1079 = vmatprep.subr.mxu0 0.0
    %1080 = vmatpush2.msra.mxu0 0.0
    %1081 = vmatprep.subr.mxu0 0.0
    %1082 = vmatpush2.msra.mxu0 0.0
    %1083 = vmatprep.mubr.f32.mxu0 0.0
    %v1084 = vand.u32 %v998, 4294901760
    %v1085 = vsub.f32 %v998, %v1084
    %v1086 = vand.u32 %v1085, 4294901760
    %v1087 = vsub.f32 %v1085, %v1086
    %v1088 = vand.u32 %v1087, 4294901760
    %1089 = vmatmul.mubr.f32.gmra.mxu0 %v1088
    %v1090 = vpop.f32.mrf.mxu0
    %v1091 = vadd.f32 0.0, %v1090
    %v1092 = vpop.f32.mrf.mxu0
    %1093 = vmatprep.mubr.f32.mxu0 0.0
    %v1094 = vand.u32 %v999, 4294901760
    %v1095 = vsub.f32 %v999, %v1094
    %v1096 = vand.u32 %v1095, 4294901760
    %v1097 = vsub.f32 %v1095, %v1096
    %v1098 = vand.u32 %v1097, 4294901760
    %1099 = vmatmul.mubr.f32.gmra.mxu0 %v1098
    %v1100 = vpop.f32.mrf.mxu0
    %v1101 = vadd.f32 0.0, %v1100
    %v1102 = vpop.f32.mrf.mxu0
    %1103 = vmatprep.mubr.f32.mxu0 0.0
    %v1104 = vand.u32 %v1000, 4294901760
    %v1105 = vsub.f32 %v1000, %v1104
    %v1106 = vand.u32 %v1105, 4294901760
    %v1107 = vsub.f32 %v1105, %v1106
    %v1108 = vand.u32 %v1107, 4294901760
    %1109 = vmatmul.mubr.f32.gmra.mxu0 %v1108
    %v1110 = vpop.f32.mrf.mxu0
    %v1111 = vadd.f32 0.0, %v1110
    %v1112 = vpop.f32.mrf.mxu0
    %1113 = vmatprep.mubr.f32.mxu0 0.0
    %v1114 = vand.u32 %v1001, 4294901760
    %v1115 = vsub.f32 %v1001, %v1114
    %v1116 = vand.u32 %v1115, 4294901760
    %v1117 = vsub.f32 %v1115, %v1116
    %v1118 = vand.u32 %v1117, 4294901760
    %1119 = vmatmul.mubr.f32.gmra.mxu0 %v1118
    %v1120 = vpop.f32.mrf.mxu0
    %v1121 = vadd.f32 0.0, %v1120
    %v1122 = vpop.f32.mrf.mxu0
    %1123 = vmatprep.mubr.f32.mxu0 0.0
    %v1124 = vand.u32 %v1002, 4294901760
    %v1125 = vsub.f32 %v1002, %v1124
    %v1126 = vand.u32 %v1125, 4294901760
    %v1127 = vsub.f32 %v1125, %v1126
    %v1128 = vand.u32 %v1127, 4294901760
    %1129 = vmatmul.mubr.f32.gmra.mxu0 %v1128
    %v1130 = vpop.f32.mrf.mxu0
    %v1131 = vadd.f32 0.0, %v1130
    %v1132 = vpop.f32.mrf.mxu0
    %1133 = vdwg.mxu0
    %1134 = vmatprep.subr.mxu0 0.0
    %v1135 = vand.u32 %v179, 4294901760
    %v1136 = vsub.f32 %v179, %v1135
    %v1137 = vand.u32 %v1136, 4294901760
    %v1138 = vsub.f32 %v1136, %v1137
    %v1139 = vand.u32 %v1138, 4294901760
    %1140 = vmatpush1.msra.mxu0 %v1139
    %1141 = vmatprep.subr.mxu0 0.0
    %v1142 = vand.u32 %v178, 4294901760
    %v1143 = vsub.f32 %v178, %v1142
    %v1144 = vand.u32 %v1143, 4294901760
    %v1145 = vsub.f32 %v1143, %v1144
    %v1146 = vand.u32 %v1145, 4294901760
    %1147 = vmatpush1.msra.mxu0 %v1146
    %1148 = vmatprep.subr.mxu0 0.0
    %v1149 = vand.u32 %v177, 4294901760
    %v1150 = vsub.f32 %v177, %v1149
    %v1151 = vand.u32 %v1150, 4294901760
    %v1152 = vsub.f32 %v1150, %v1151
    %v1153 = vand.u32 %v1152, 4294901760
    %1154 = vmatpush1.msra.mxu0 %v1153
    %1155 = vmatprep.subr.mxu0 0.0
    %v1156 = vand.u32 %v176, 4294901760
    %v1157 = vsub.f32 %v176, %v1156
    %v1158 = vand.u32 %v1157, 4294901760
    %v1159 = vsub.f32 %v1157, %v1158
    %v1160 = vand.u32 %v1159, 4294901760
    %1161 = vmatpush1.msra.mxu0 %v1160
    %1162 = vmatprep.subr.mxu0 0.0
    %v1163 = vand.u32 %v175, 4294901760
    %v1164 = vsub.f32 %v175, %v1163
    %v1165 = vand.u32 %v1164, 4294901760
    %v1166 = vsub.f32 %v1164, %v1165
    %v1167 = vand.u32 %v1166, 4294901760
    %1168 = vmatpush1.msra.mxu0 %v1167
    %1169 = vmatprep.subr.mxu0 0.0
    %v1170 = vand.u32 %v174, 4294901760
    %v1171 = vsub.f32 %v174, %v1170
    %v1172 = vand.u32 %v1171, 4294901760
    %v1173 = vsub.f32 %v1171, %v1172
    %v1174 = vand.u32 %v1173, 4294901760
    %1175 = vmatpush1.msra.mxu0 %v1174
    %1176 = vmatprep.subr.mxu0 0.0
    %v1177 = vand.u32 %v173, 4294901760
    %v1178 = vsub.f32 %v173, %v1177
    %v1179 = vand.u32 %v1178, 4294901760
    %v1180 = vsub.f32 %v1178, %v1179
    %v1181 = vand.u32 %v1180, 4294901760
    %1182 = vmatpush1.msra.mxu0 %v1181
    %1183 = vmatprep.subr.mxu0 0.0
    %v1184 = vand.u32 %v172, 4294901760
    %v1185 = vsub.f32 %v172, %v1184
    %v1186 = vand.u32 %v1185, 4294901760
    %v1187 = vsub.f32 %v1185, %v1186
    %v1188 = vand.u32 %v1187, 4294901760
    %1189 = vmatpush1.msra.mxu0 %v1188
    %1190 = vmatprep.subr.mxu0 0.0
    %v1191 = vand.u32 %v171, 4294901760
    %v1192 = vsub.f32 %v171, %v1191
    %v1193 = vand.u32 %v1192, 4294901760
    %v1194 = vsub.f32 %v1192, %v1193
    %v1195 = vand.u32 %v1194, 4294901760
    %1196 = vmatpush1.msra.mxu0 %v1195
    %1197 = vmatprep.subr.mxu0 0.0
    %v1198 = vand.u32 %v170, 4294901760
    %v1199 = vsub.f32 %v170, %v1198
    %v1200 = vand.u32 %v1199, 4294901760
    %v1201 = vsub.f32 %v1199, %v1200
    %v1202 = vand.u32 %v1201, 4294901760
    %1203 = vmatpush1.msra.mxu0 %v1202
    %1204 = vmatprep.subr.mxu0 0.0
    %v1205 = vand.u32 %v169, 4294901760
    %v1206 = vsub.f32 %v169, %v1205
    %v1207 = vand.u32 %v1206, 4294901760
    %v1208 = vsub.f32 %v1206, %v1207
    %v1209 = vand.u32 %v1208, 4294901760
    %1210 = vmatpush1.msra.mxu0 %v1209
    %1211 = vmatprep.subr.mxu0 0.0
    %v1212 = vand.u32 %v168, 4294901760
    %v1213 = vsub.f32 %v168, %v1212
    %v1214 = vand.u32 %v1213, 4294901760
    %v1215 = vsub.f32 %v1213, %v1214
    %v1216 = vand.u32 %v1215, 4294901760
    %1217 = vmatpush1.msra.mxu0 %v1216
    %1218 = vmatprep.subr.mxu0 0.0
    %v1219 = vand.u32 %v167, 4294901760
    %v1220 = vsub.f32 %v167, %v1219
    %v1221 = vand.u32 %v1220, 4294901760
    %v1222 = vsub.f32 %v1220, %v1221
    %v1223 = vand.u32 %v1222, 4294901760
    %1224 = vmatpush1.msra.mxu0 %v1223
    %1225 = vmatprep.subr.mxu0 0.0
    %v1226 = vand.u32 %v166, 4294901760
    %v1227 = vsub.f32 %v166, %v1226
    %v1228 = vand.u32 %v1227, 4294901760
    %v1229 = vsub.f32 %v1227, %v1228
    %v1230 = vand.u32 %v1229, 4294901760
    %1231 = vmatpush1.msra.mxu0 %v1230
    %1232 = vmatprep.subr.mxu0 0.0
    %v1233 = vand.u32 %v165, 4294901760
    %v1234 = vsub.f32 %v165, %v1233
    %v1235 = vand.u32 %v1234, 4294901760
    %v1236 = vsub.f32 %v1234, %v1235
    %v1237 = vand.u32 %v1236, 4294901760
    %1238 = vmatpush1.msra.mxu0 %v1237
    %1239 = vmatprep.subr.mxu0 0.0
    %v1240 = vand.u32 %v164, 4294901760
    %v1241 = vsub.f32 %v164, %v1240
    %v1242 = vand.u32 %v1241, 4294901760
    %v1243 = vsub.f32 %v1241, %v1242
    %v1244 = vand.u32 %v1243, 4294901760
    %1245 = vmatpush1.msra.mxu0 %v1244
    %1246 = vmatprep.subr.mxu0 0.0
    %1247 = vmatpush2.msra.mxu0 0.0
    %1248 = vmatprep.subr.mxu0 0.0
    %1249 = vmatpush2.msra.mxu0 0.0
    %1250 = vmatprep.subr.mxu0 0.0
    %1251 = vmatpush2.msra.mxu0 0.0
    %1252 = vmatprep.subr.mxu0 0.0
    %1253 = vmatpush2.msra.mxu0 0.0
    %1254 = vmatprep.subr.mxu0 0.0
    %1255 = vmatpush2.msra.mxu0 0.0
    %1256 = vmatprep.subr.mxu0 0.0
    %1257 = vmatpush2.msra.mxu0 0.0
    %1258 = vmatprep.subr.mxu0 0.0
    %1259 = vmatpush2.msra.mxu0 0.0
    %1260 = vmatprep.subr.mxu0 0.0
    %1261 = vmatpush2.msra.mxu0 0.0
    %1262 = vmatprep.subr.mxu0 0.0
    %1263 = vmatpush2.msra.mxu0 0.0
    %1264 = vmatprep.subr.mxu0 0.0
    %1265 = vmatpush2.msra.mxu0 0.0
    %1266 = vmatprep.subr.mxu0 0.0
    %1267 = vmatpush2.msra.mxu0 0.0
    %1268 = vmatprep.subr.mxu0 0.0
    %1269 = vmatpush2.msra.mxu0 0.0
    %1270 = vmatprep.subr.mxu0 0.0
    %1271 = vmatpush2.msra.mxu0 0.0
    %1272 = vmatprep.subr.mxu0 0.0
    %1273 = vmatpush2.msra.mxu0 0.0
    %1274 = vmatprep.subr.mxu0 0.0
    %1275 = vmatpush2.msra.mxu0 0.0
    %1276 = vmatprep.subr.mxu0 0.0
    %1277 = vmatpush2.msra.mxu0 0.0
    %1278 = vmatprep.mubr.f32.mxu0 0.0
    %v1279 = vand.u32 %v998, 4294901760
    %1280 = vmatmul.mubr.f32.gmra.mxu0 %v1279
    %v1281 = vpop.f32.mrf.mxu0
    %v1282 = vadd.f32 %v1091, %v1281
    %v1283 = vpop.f32.mrf.mxu0
    %1284 = vmatprep.mubr.f32.mxu0 0.0
    %v1285 = vand.u32 %v999, 4294901760
    %1286 = vmatmul.mubr.f32.gmra.mxu0 %v1285
    %v1287 = vpop.f32.mrf.mxu0
    %v1288 = vadd.f32 %v1101, %v1287
    %v1289 = vpop.f32.mrf.mxu0
    %1290 = vmatprep.mubr.f32.mxu0 0.0
    %v1291 = vand.u32 %v1000, 4294901760
    %1292 = vmatmul.mubr.f32.gmra.mxu0 %v1291
    %v1293 = vpop.f32.mrf.mxu0
    %v1294 = vadd.f32 %v1111, %v1293
    %v1295 = vpop.f32.mrf.mxu0
    %1296 = vmatprep.mubr.f32.mxu0 0.0
    %v1297 = vand.u32 %v1001, 4294901760
    %1298 = vmatmul.mubr.f32.gmra.mxu0 %v1297
    %v1299 = vpop.f32.mrf.mxu0
    %v1300 = vadd.f32 %v1121, %v1299
    %v1301 = vpop.f32.mrf.mxu0
    %1302 = vmatprep.mubr.f32.mxu0 0.0
    %v1303 = vand.u32 %v1002, 4294901760
    %1304 = vmatmul.mubr.f32.gmra.mxu0 %v1303
    %v1305 = vpop.f32.mrf.mxu0
    %v1306 = vadd.f32 %v1131, %v1305
    %v1307 = vpop.f32.mrf.mxu0
    %1308 = vdwg.mxu0
    %1309 = vmatprep.subr.mxu0 0.0
    %v1310 = vand.u32 %v179, 4294901760
    %v1311 = vsub.f32 %v179, %v1310
    %1312 = vmatpush1.msra.mxu0 %v1311
    %1313 = vmatprep.subr.mxu0 0.0
    %v1314 = vand.u32 %v178, 4294901760
    %v1315 = vsub.f32 %v178, %v1314
    %1316 = vmatpush1.msra.mxu0 %v1315
    %1317 = vmatprep.subr.mxu0 0.0
    %v1318 = vand.u32 %v177, 4294901760
    %v1319 = vsub.f32 %v177, %v1318
    %1320 = vmatpush1.msra.mxu0 %v1319
    %1321 = vmatprep.subr.mxu0 0.0
    %v1322 = vand.u32 %v176, 4294901760
    %v1323 = vsub.f32 %v176, %v1322
    %1324 = vmatpush1.msra.mxu0 %v1323
    %1325 = vmatprep.subr.mxu0 0.0
    %v1326 = vand.u32 %v175, 4294901760
    %v1327 = vsub.f32 %v175, %v1326
    %1328 = vmatpush1.msra.mxu0 %v1327
    %1329 = vmatprep.subr.mxu0 0.0
    %v1330 = vand.u32 %v174, 4294901760
    %v1331 = vsub.f32 %v174, %v1330
    %1332 = vmatpush1.msra.mxu0 %v1331
    %1333 = vmatprep.subr.mxu0 0.0
    %v1334 = vand.u32 %v173, 4294901760
    %v1335 = vsub.f32 %v173, %v1334
    %1336 = vmatpush1.msra.mxu0 %v1335
    %1337 = vmatprep.subr.mxu0 0.0
    %v1338 = vand.u32 %v172, 4294901760
    %v1339 = vsub.f32 %v172, %v1338
    %1340 = vmatpush1.msra.mxu0 %v1339
    %1341 = vmatprep.subr.mxu0 0.0
    %v1342 = vand.u32 %v171, 4294901760
    %v1343 = vsub.f32 %v171, %v1342
    %1344 = vmatpush1.msra.mxu0 %v1343
    %1345 = vmatprep.subr.mxu0 0.0
    %v1346 = vand.u32 %v170, 4294901760
    %v1347 = vsub.f32 %v170, %v1346
    %1348 = vmatpush1.msra.mxu0 %v1347
    %1349 = vmatprep.subr.mxu0 0.0
    %v1350 = vand.u32 %v169, 4294901760
    %v1351 = vsub.f32 %v169, %v1350
    %1352 = vmatpush1.msra.mxu0 %v1351
    %1353 = vmatprep.subr.mxu0 0.0
    %v1354 = vand.u32 %v168, 4294901760
    %v1355 = vsub.f32 %v168, %v1354
    %1356 = vmatpush1.msra.mxu0 %v1355
    %1357 = vmatprep.subr.mxu0 0.0
    %v1358 = vand.u32 %v167, 4294901760
    %v1359 = vsub.f32 %v167, %v1358
    %1360 = vmatpush1.msra.mxu0 %v1359
    %1361 = vmatprep.subr.mxu0 0.0
    %v1362 = vand.u32 %v166, 4294901760
    %v1363 = vsub.f32 %v166, %v1362
    %1364 = vmatpush1.msra.mxu0 %v1363
    %1365 = vmatprep.subr.mxu0 0.0
    %v1366 = vand.u32 %v165, 4294901760
    %v1367 = vsub.f32 %v165, %v1366
    %1368 = vmatpush1.msra.mxu0 %v1367
    %1369 = vmatprep.subr.mxu0 0.0
    %v1370 = vand.u32 %v164, 4294901760
    %v1371 = vsub.f32 %v164, %v1370
    %1372 = vmatpush1.msra.mxu0 %v1371
    %1373 = vmatprep.subr.mxu0 0.0
    %1374 = vmatpush2.msra.mxu0 0.0
    %1375 = vmatprep.subr.mxu0 0.0
    %1376 = vmatpush2.msra.mxu0 0.0
    %1377 = vmatprep.subr.mxu0 0.0
    %1378 = vmatpush2.msra.mxu0 0.0
    %1379 = vmatprep.subr.mxu0 0.0
    %1380 = vmatpush2.msra.mxu0 0.0
    %1381 = vmatprep.subr.mxu0 0.0
    %1382 = vmatpush2.msra.mxu0 0.0
    %1383 = vmatprep.subr.mxu0 0.0
    %1384 = vmatpush2.msra.mxu0 0.0
    %1385 = vmatprep.subr.mxu0 0.0
    %1386 = vmatpush2.msra.mxu0 0.0
    %1387 = vmatprep.subr.mxu0 0.0
    %1388 = vmatpush2.msra.mxu0 0.0
    %1389 = vmatprep.subr.mxu0 0.0
    %1390 = vmatpush2.msra.mxu0 0.0
    %1391 = vmatprep.subr.mxu0 0.0
    %1392 = vmatpush2.msra.mxu0 0.0
    %1393 = vmatprep.subr.mxu0 0.0
    %1394 = vmatpush2.msra.mxu0 0.0
    %1395 = vmatprep.subr.mxu0 0.0
    %1396 = vmatpush2.msra.mxu0 0.0
    %1397 = vmatprep.subr.mxu0 0.0
    %1398 = vmatpush2.msra.mxu0 0.0
    %1399 = vmatprep.subr.mxu0 0.0
    %1400 = vmatpush2.msra.mxu0 0.0
    %1401 = vmatprep.subr.mxu0 0.0
    %1402 = vmatpush2.msra.mxu0 0.0
    %1403 = vmatprep.subr.mxu0 0.0
    %1404 = vmatpush2.msra.mxu0 0.0
    %1405 = vmatprep.mubr.f32.mxu0 0.0
    %v1406 = vand.u32 %v998, 4294901760
    %v1407 = vsub.f32 %v998, %v1406
    %1408 = vmatmul.mubr.f32.gmra.mxu0 %v1407
    %v1409 = vpop.f32.mrf.mxu0
    %v1410 = vadd.f32 %v1282, %v1409
    %v1411 = vpop.f32.mrf.mxu0
    %1412 = vmatprep.mubr.f32.mxu0 0.0
    %v1413 = vand.u32 %v999, 4294901760
    %v1414 = vsub.f32 %v999, %v1413
    %1415 = vmatmul.mubr.f32.gmra.mxu0 %v1414
    %v1416 = vpop.f32.mrf.mxu0
    %v1417 = vadd.f32 %v1288, %v1416
    %v1418 = vpop.f32.mrf.mxu0
    %1419 = vmatprep.mubr.f32.mxu0 0.0
    %v1420 = vand.u32 %v1000, 4294901760
    %v1421 = vsub.f32 %v1000, %v1420
    %1422 = vmatmul.mubr.f32.gmra.mxu0 %v1421
    %v1423 = vpop.f32.mrf.mxu0
    %v1424 = vadd.f32 %v1294, %v1423
    %v1425 = vpop.f32.mrf.mxu0
    %1426 = vmatprep.mubr.f32.mxu0 0.0
    %v1427 = vand.u32 %v1001, 4294901760
    %v1428 = vsub.f32 %v1001, %v1427
    %1429 = vmatmul.mubr.f32.gmra.mxu0 %v1428
    %v1430 = vpop.f32.mrf.mxu0
    %v1431 = vadd.f32 %v1300, %v1430
    %v1432 = vpop.f32.mrf.mxu0
    %1433 = vmatprep.mubr.f32.mxu0 0.0
    %v1434 = vand.u32 %v1002, 4294901760
    %v1435 = vsub.f32 %v1002, %v1434
    %1436 = vmatmul.mubr.f32.gmra.mxu0 %v1435
    %v1437 = vpop.f32.mrf.mxu0
    %v1438 = vadd.f32 %v1306, %v1437
    %v1439 = vpop.f32.mrf.mxu0
    %1440 = vdwg.mxu0
    %1441 = vmatprep.subr.mxu0 0.0
    %v1442 = vand.u32 %v179, 4294901760
    %1443 = vmatpush1.msra.mxu0 %v1442
    %1444 = vmatprep.subr.mxu0 0.0
    %v1445 = vand.u32 %v178, 4294901760
    %1446 = vmatpush1.msra.mxu0 %v1445
    %1447 = vmatprep.subr.mxu0 0.0
    %v1448 = vand.u32 %v177, 4294901760
    %1449 = vmatpush1.msra.mxu0 %v1448
    %1450 = vmatprep.subr.mxu0 0.0
    %v1451 = vand.u32 %v176, 4294901760
    %1452 = vmatpush1.msra.mxu0 %v1451
    %1453 = vmatprep.subr.mxu0 0.0
    %v1454 = vand.u32 %v175, 4294901760
    %1455 = vmatpush1.msra.mxu0 %v1454
    %1456 = vmatprep.subr.mxu0 0.0
    %v1457 = vand.u32 %v174, 4294901760
    %1458 = vmatpush1.msra.mxu0 %v1457
    %1459 = vmatprep.subr.mxu0 0.0
    %v1460 = vand.u32 %v173, 4294901760
    %1461 = vmatpush1.msra.mxu0 %v1460
    %1462 = vmatprep.subr.mxu0 0.0
    %v1463 = vand.u32 %v172, 4294901760
    %1464 = vmatpush1.msra.mxu0 %v1463
    %1465 = vmatprep.subr.mxu0 0.0
    %v1466 = vand.u32 %v171, 4294901760
    %1467 = vmatpush1.msra.mxu0 %v1466
    %1468 = vmatprep.subr.mxu0 0.0
    %v1469 = vand.u32 %v170, 4294901760
    %1470 = vmatpush1.msra.mxu0 %v1469
    %1471 = vmatprep.subr.mxu0 0.0
    %v1472 = vand.u32 %v169, 4294901760
    %1473 = vmatpush1.msra.mxu0 %v1472
    %1474 = vmatprep.subr.mxu0 0.0
    %v1475 = vand.u32 %v168, 4294901760
    %1476 = vmatpush1.msra.mxu0 %v1475
    %1477 = vmatprep.subr.mxu0 0.0
    %v1478 = vand.u32 %v167, 4294901760
    %1479 = vmatpush1.msra.mxu0 %v1478
    %1480 = vmatprep.subr.mxu0 0.0
    %v1481 = vand.u32 %v166, 4294901760
    %1482 = vmatpush1.msra.mxu0 %v1481
    %1483 = vmatprep.subr.mxu0 0.0
    %v1484 = vand.u32 %v165, 4294901760
    %1485 = vmatpush1.msra.mxu0 %v1484
    %1486 = vmatprep.subr.mxu0 0.0
    %v1487 = vand.u32 %v164, 4294901760
    %1488 = vmatpush1.msra.mxu0 %v1487
    %1489 = vmatprep.subr.mxu0 0.0
    %1490 = vmatpush2.msra.mxu0 0.0
    %1491 = vmatprep.subr.mxu0 0.0
    %1492 = vmatpush2.msra.mxu0 0.0
    %1493 = vmatprep.subr.mxu0 0.0
    %1494 = vmatpush2.msra.mxu0 0.0
    %1495 = vmatprep.subr.mxu0 0.0
    %1496 = vmatpush2.msra.mxu0 0.0
    %1497 = vmatprep.subr.mxu0 0.0
    %1498 = vmatpush2.msra.mxu0 0.0
    %1499 = vmatprep.subr.mxu0 0.0
    %1500 = vmatpush2.msra.mxu0 0.0
    %1501 = vmatprep.subr.mxu0 0.0
    %1502 = vmatpush2.msra.mxu0 0.0
    %1503 = vmatprep.subr.mxu0 0.0
    %1504 = vmatpush2.msra.mxu0 0.0
    %1505 = vmatprep.subr.mxu0 0.0
    %1506 = vmatpush2.msra.mxu0 0.0
    %1507 = vmatprep.subr.mxu0 0.0
    %1508 = vmatpush2.msra.mxu0 0.0
    %1509 = vmatprep.subr.mxu0 0.0
    %1510 = vmatpush2.msra.mxu0 0.0
    %1511 = vmatprep.subr.mxu0 0.0
    %1512 = vmatpush2.msra.mxu0 0.0
    %1513 = vmatprep.subr.mxu0 0.0
    %1514 = vmatpush2.msra.mxu0 0.0
    %1515 = vmatprep.subr.mxu0 0.0
    %1516 = vmatpush2.msra.mxu0 0.0
    %1517 = vmatprep.subr.mxu0 0.0
    %1518 = vmatpush2.msra.mxu0 0.0
    %1519 = vmatprep.subr.mxu0 0.0
    %1520 = vmatpush2.msra.mxu0 0.0
    %1521 = vmatprep.mubr.f32.mxu0 0.0
    %v1522 = vand.u32 %v998, 4294901760
    %v1523 = vsub.f32 %v998, %v1522
    %v1524 = vand.u32 %v1523, 4294901760
    %1525 = vmatmul.mubr.f32.gmra.mxu0 %v1524
    %v1526 = vpop.f32.mrf.mxu0
    %v1527 = vadd.f32 %v1410, %v1526
    %v1528 = vpop.f32.mrf.mxu0
    %1529 = vmatprep.mubr.f32.mxu0 0.0
    %v1530 = vand.u32 %v999, 4294901760
    %v1531 = vsub.f32 %v999, %v1530
    %v1532 = vand.u32 %v1531, 4294901760
    %1533 = vmatmul.mubr.f32.gmra.mxu0 %v1532
    %v1534 = vpop.f32.mrf.mxu0
    %v1535 = vadd.f32 %v1417, %v1534
    %v1536 = vpop.f32.mrf.mxu0
    %1537 = vmatprep.mubr.f32.mxu0 0.0
    %v1538 = vand.u32 %v1000, 4294901760
    %v1539 = vsub.f32 %v1000, %v1538
    %v1540 = vand.u32 %v1539, 4294901760
    %1541 = vmatmul.mubr.f32.gmra.mxu0 %v1540
    %v1542 = vpop.f32.mrf.mxu0
    %v1543 = vadd.f32 %v1424, %v1542
    %v1544 = vpop.f32.mrf.mxu0
    %1545 = vmatprep.mubr.f32.mxu0 0.0
    %v1546 = vand.u32 %v1001, 4294901760
    %v1547 = vsub.f32 %v1001, %v1546
    %v1548 = vand.u32 %v1547, 4294901760
    %1549 = vmatmul.mubr.f32.gmra.mxu0 %v1548
    %v1550 = vpop.f32.mrf.mxu0
    %v1551 = vadd.f32 %v1431, %v1550
    %v1552 = vpop.f32.mrf.mxu0
    %1553 = vmatprep.mubr.f32.mxu0 0.0
    %v1554 = vand.u32 %v1002, 4294901760
    %v1555 = vsub.f32 %v1002, %v1554
    %v1556 = vand.u32 %v1555, 4294901760
    %1557 = vmatmul.mubr.f32.gmra.mxu0 %v1556
    %v1558 = vpop.f32.mrf.mxu0
    %v1559 = vadd.f32 %v1438, %v1558
    %v1560 = vpop.f32.mrf.mxu0
    %1561 = vdwg.mxu0
    %1562 = vmatprep.subr.mxu0 0.0
    %v1563 = vand.u32 %v179, 4294901760
    %v1564 = vsub.f32 %v179, %v1563
    %v1565 = vand.u32 %v1564, 4294901760
    %1566 = vmatpush1.msra.mxu0 %v1565
    %1567 = vmatprep.subr.mxu0 0.0
    %v1568 = vand.u32 %v178, 4294901760
    %v1569 = vsub.f32 %v178, %v1568
    %v1570 = vand.u32 %v1569, 4294901760
    %1571 = vmatpush1.msra.mxu0 %v1570
    %1572 = vmatprep.subr.mxu0 0.0
    %v1573 = vand.u32 %v177, 4294901760
    %v1574 = vsub.f32 %v177, %v1573
    %v1575 = vand.u32 %v1574, 4294901760
    %1576 = vmatpush1.msra.mxu0 %v1575
    %1577 = vmatprep.subr.mxu0 0.0
    %v1578 = vand.u32 %v176, 4294901760
    %v1579 = vsub.f32 %v176, %v1578
    %v1580 = vand.u32 %v1579, 4294901760
    %1581 = vmatpush1.msra.mxu0 %v1580
    %1582 = vmatprep.subr.mxu0 0.0
    %v1583 = vand.u32 %v175, 4294901760
    %v1584 = vsub.f32 %v175, %v1583
    %v1585 = vand.u32 %v1584, 4294901760
    %1586 = vmatpush1.msra.mxu0 %v1585
    %1587 = vmatprep.subr.mxu0 0.0
    %v1588 = vand.u32 %v174, 4294901760
    %v1589 = vsub.f32 %v174, %v1588
    %v1590 = vand.u32 %v1589, 4294901760
    %1591 = vmatpush1.msra.mxu0 %v1590
    %1592 = vmatprep.subr.mxu0 0.0
    %v1593 = vand.u32 %v173, 4294901760
    %v1594 = vsub.f32 %v173, %v1593
    %v1595 = vand.u32 %v1594, 4294901760
    %1596 = vmatpush1.msra.mxu0 %v1595
    %1597 = vmatprep.subr.mxu0 0.0
    %v1598 = vand.u32 %v172, 4294901760
    %v1599 = vsub.f32 %v172, %v1598
    %v1600 = vand.u32 %v1599, 4294901760
    %1601 = vmatpush1.msra.mxu0 %v1600
    %1602 = vmatprep.subr.mxu0 0.0
    %v1603 = vand.u32 %v171, 4294901760
    %v1604 = vsub.f32 %v171, %v1603
    %v1605 = vand.u32 %v1604, 4294901760
    %1606 = vmatpush1.msra.mxu0 %v1605
    %1607 = vmatprep.subr.mxu0 0.0
    %v1608 = vand.u32 %v170, 4294901760
    %v1609 = vsub.f32 %v170, %v1608
    %v1610 = vand.u32 %v1609, 4294901760
    %1611 = vmatpush1.msra.mxu0 %v1610
    %1612 = vmatprep.subr.mxu0 0.0
    %v1613 = vand.u32 %v169, 4294901760
    %v1614 = vsub.f32 %v169, %v1613
    %v1615 = vand.u32 %v1614, 4294901760
    %1616 = vmatpush1.msra.mxu0 %v1615
    %1617 = vmatprep.subr.mxu0 0.0
    %v1618 = vand.u32 %v168, 4294901760
    %v1619 = vsub.f32 %v168, %v1618
    %v1620 = vand.u32 %v1619, 4294901760
    %1621 = vmatpush1.msra.mxu0 %v1620
    %1622 = vmatprep.subr.mxu0 0.0
    %v1623 = vand.u32 %v167, 4294901760
    %v1624 = vsub.f32 %v167, %v1623
    %v1625 = vand.u32 %v1624, 4294901760
    %1626 = vmatpush1.msra.mxu0 %v1625
    %1627 = vmatprep.subr.mxu0 0.0
    %v1628 = vand.u32 %v166, 4294901760
    %v1629 = vsub.f32 %v166, %v1628
    %v1630 = vand.u32 %v1629, 4294901760
    %1631 = vmatpush1.msra.mxu0 %v1630
    %1632 = vmatprep.subr.mxu0 0.0
    %v1633 = vand.u32 %v165, 4294901760
    %v1634 = vsub.f32 %v165, %v1633
    %v1635 = vand.u32 %v1634, 4294901760
    %1636 = vmatpush1.msra.mxu0 %v1635
    %1637 = vmatprep.subr.mxu0 0.0
    %v1638 = vand.u32 %v164, 4294901760
    %v1639 = vsub.f32 %v164, %v1638
    %v1640 = vand.u32 %v1639, 4294901760
    %1641 = vmatpush1.msra.mxu0 %v1640
    %1642 = vmatprep.subr.mxu0 0.0
    %1643 = vmatpush2.msra.mxu0 0.0
    %1644 = vmatprep.subr.mxu0 0.0
    %1645 = vmatpush2.msra.mxu0 0.0
    %1646 = vmatprep.subr.mxu0 0.0
    %1647 = vmatpush2.msra.mxu0 0.0
    %1648 = vmatprep.subr.mxu0 0.0
    %1649 = vmatpush2.msra.mxu0 0.0
    %1650 = vmatprep.subr.mxu0 0.0
    %1651 = vmatpush2.msra.mxu0 0.0
    %1652 = vmatprep.subr.mxu0 0.0
    %1653 = vmatpush2.msra.mxu0 0.0
    %1654 = vmatprep.subr.mxu0 0.0
    %1655 = vmatpush2.msra.mxu0 0.0
    %1656 = vmatprep.subr.mxu0 0.0
    %1657 = vmatpush2.msra.mxu0 0.0
    %1658 = vmatprep.subr.mxu0 0.0
    %1659 = vmatpush2.msra.mxu0 0.0
    %1660 = vmatprep.subr.mxu0 0.0
    %1661 = vmatpush2.msra.mxu0 0.0
    %1662 = vmatprep.subr.mxu0 0.0
    %1663 = vmatpush2.msra.mxu0 0.0
    %1664 = vmatprep.subr.mxu0 0.0
    %1665 = vmatpush2.msra.mxu0 0.0
    %1666 = vmatprep.subr.mxu0 0.0
    %1667 = vmatpush2.msra.mxu0 0.0
    %1668 = vmatprep.subr.mxu0 0.0
    %1669 = vmatpush2.msra.mxu0 0.0
    %1670 = vmatprep.subr.mxu0 0.0
    %1671 = vmatpush2.msra.mxu0 0.0
    %1672 = vmatprep.subr.mxu0 0.0
    %1673 = vmatpush2.msra.mxu0 0.0
    %1674 = vmatprep.mubr.f32.mxu0 0.0
    %v1675 = vand.u32 %v998, 4294901760
    %1676 = vmatmul.mubr.f32.gmra.mxu0 %v1675
    %v1677 = vpop.f32.mrf.mxu0
    %v1678 = vadd.f32 %v1527, %v1677
    %v1679 = vpop.f32.mrf.mxu0
    %1680 = vmatprep.mubr.f32.mxu0 0.0
    %v1681 = vand.u32 %v999, 4294901760
    %1682 = vmatmul.mubr.f32.gmra.mxu0 %v1681
    %v1683 = vpop.f32.mrf.mxu0
    %v1684 = vadd.f32 %v1535, %v1683
    %v1685 = vpop.f32.mrf.mxu0
    %1686 = vmatprep.mubr.f32.mxu0 0.0
    %v1687 = vand.u32 %v1000, 4294901760
    %1688 = vmatmul.mubr.f32.gmra.mxu0 %v1687
    %v1689 = vpop.f32.mrf.mxu0
    %v1690 = vadd.f32 %v1543, %v1689
    %v1691 = vpop.f32.mrf.mxu0
    %1692 = vmatprep.mubr.f32.mxu0 0.0
    %v1693 = vand.u32 %v1001, 4294901760
    %1694 = vmatmul.mubr.f32.gmra.mxu0 %v1693
    %v1695 = vpop.f32.mrf.mxu0
    %v1696 = vadd.f32 %v1551, %v1695
    %v1697 = vpop.f32.mrf.mxu0
    %1698 = vmatprep.mubr.f32.mxu0 0.0
    %v1699 = vand.u32 %v1002, 4294901760
    %1700 = vmatmul.mubr.f32.gmra.mxu0 %v1699
    %v1701 = vpop.f32.mrf.mxu0
    %v1702 = vadd.f32 %v1559, %v1701
    %v1703 = vpop.f32.mrf.mxu0
    %1704 = vdwg.mxu0
    %1705 = vmatprep.subr.mxu0 0.0
    %v1706 = vand.u32 %v179, 4294901760
    %1707 = vmatpush1.msra.mxu0 %v1706
    %1708 = vmatprep.subr.mxu0 0.0
    %v1709 = vand.u32 %v178, 4294901760
    %1710 = vmatpush1.msra.mxu0 %v1709
    %1711 = vmatprep.subr.mxu0 0.0
    %v1712 = vand.u32 %v177, 4294901760
    %1713 = vmatpush1.msra.mxu0 %v1712
    %1714 = vmatprep.subr.mxu0 0.0
    %v1715 = vand.u32 %v176, 4294901760
    %1716 = vmatpush1.msra.mxu0 %v1715
    %1717 = vmatprep.subr.mxu0 0.0
    %v1718 = vand.u32 %v175, 4294901760
    %1719 = vmatpush1.msra.mxu0 %v1718
    %1720 = vmatprep.subr.mxu0 0.0
    %v1721 = vand.u32 %v174, 4294901760
    %1722 = vmatpush1.msra.mxu0 %v1721
    %1723 = vmatprep.subr.mxu0 0.0
    %v1724 = vand.u32 %v173, 4294901760
    %1725 = vmatpush1.msra.mxu0 %v1724
    %1726 = vmatprep.subr.mxu0 0.0
    %v1727 = vand.u32 %v172, 4294901760
    %1728 = vmatpush1.msra.mxu0 %v1727
    %1729 = vmatprep.subr.mxu0 0.0
    %v1730 = vand.u32 %v171, 4294901760
    %1731 = vmatpush1.msra.mxu0 %v1730
    %1732 = vmatprep.subr.mxu0 0.0
    %v1733 = vand.u32 %v170, 4294901760
    %1734 = vmatpush1.msra.mxu0 %v1733
    %1735 = vmatprep.subr.mxu0 0.0
    %v1736 = vand.u32 %v169, 4294901760
    %1737 = vmatpush1.msra.mxu0 %v1736
    %1738 = vmatprep.subr.mxu0 0.0
    %v1739 = vand.u32 %v168, 4294901760
    %1740 = vmatpush1.msra.mxu0 %v1739
    %1741 = vmatprep.subr.mxu0 0.0
    %v1742 = vand.u32 %v167, 4294901760
    %1743 = vmatpush1.msra.mxu0 %v1742
    %1744 = vmatprep.subr.mxu0 0.0
    %v1745 = vand.u32 %v166, 4294901760
    %1746 = vmatpush1.msra.mxu0 %v1745
    %1747 = vmatprep.subr.mxu0 0.0
    %v1748 = vand.u32 %v165, 4294901760
    %1749 = vmatpush1.msra.mxu0 %v1748
    %1750 = vmatprep.subr.mxu0 0.0
    %v1751 = vand.u32 %v164, 4294901760
    %1752 = vmatpush1.msra.mxu0 %v1751
    %1753 = vmatprep.subr.mxu0 0.0
    %1754 = vmatpush2.msra.mxu0 0.0
    %1755 = vmatprep.subr.mxu0 0.0
    %1756 = vmatpush2.msra.mxu0 0.0
    %1757 = vmatprep.subr.mxu0 0.0
    %1758 = vmatpush2.msra.mxu0 0.0
    %1759 = vmatprep.subr.mxu0 0.0
    %1760 = vmatpush2.msra.mxu0 0.0
    %1761 = vmatprep.subr.mxu0 0.0
    %1762 = vmatpush2.msra.mxu0 0.0
    %1763 = vmatprep.subr.mxu0 0.0
    %1764 = vmatpush2.msra.mxu0 0.0
    %1765 = vmatprep.subr.mxu0 0.0
    %1766 = vmatpush2.msra.mxu0 0.0
    %1767 = vmatprep.subr.mxu0 0.0
    %1768 = vmatpush2.msra.mxu0 0.0
    %1769 = vmatprep.subr.mxu0 0.0
    %1770 = vmatpush2.msra.mxu0 0.0
    %1771 = vmatprep.subr.mxu0 0.0
    %1772 = vmatpush2.msra.mxu0 0.0
    %1773 = vmatprep.subr.mxu0 0.0
    %1774 = vmatpush2.msra.mxu0 0.0
    %1775 = vmatprep.subr.mxu0 0.0
    %1776 = vmatpush2.msra.mxu0 0.0
    %1777 = vmatprep.subr.mxu0 0.0
    %1778 = vmatpush2.msra.mxu0 0.0
    %1779 = vmatprep.subr.mxu0 0.0
    %1780 = vmatpush2.msra.mxu0 0.0
    %1781 = vmatprep.subr.mxu0 0.0
    %1782 = vmatpush2.msra.mxu0 0.0
    %1783 = vmatprep.subr.mxu0 0.0
    %1784 = vmatpush2.msra.mxu0 0.0
    %1785 = vmatprep.mubr.f32.mxu0 0.0
    %v1786 = vand.u32 %v998, 4294901760
    %1787 = vmatmul.mubr.f32.gmra.mxu0 %v1786
    %v1788 = vpop.f32.mrf.mxu0
    %v1789 = vadd.f32 %v1678, %v1788
    %v1790 = vpop.f32.mrf.mxu0
    %1791 = vmatprep.mubr.f32.mxu0 0.0
    %v1792 = vand.u32 %v999, 4294901760
    %1793 = vmatmul.mubr.f32.gmra.mxu0 %v1792
    %v1794 = vpop.f32.mrf.mxu0
    %v1795 = vadd.f32 %v1684, %v1794
    %v1796 = vpop.f32.mrf.mxu0
    %1797 = vmatprep.mubr.f32.mxu0 0.0
    %v1798 = vand.u32 %v1000, 4294901760
    %1799 = vmatmul.mubr.f32.gmra.mxu0 %v1798
    %v1800 = vpop.f32.mrf.mxu0
    %v1801 = vadd.f32 %v1690, %v1800
    %v1802 = vpop.f32.mrf.mxu0
    %1803 = vmatprep.mubr.f32.mxu0 0.0
    %v1804 = vand.u32 %v1001, 4294901760
    %1805 = vmatmul.mubr.f32.gmra.mxu0 %v1804
    %v1806 = vpop.f32.mrf.mxu0
    %v1807 = vadd.f32 %v1696, %v1806
    %v1808 = vpop.f32.mrf.mxu0
    %1809 = vmatprep.mubr.f32.mxu0 0.0
    %v1810 = vand.u32 %v1002, 4294901760
    %1811 = vmatmul.mubr.f32.gmra.mxu0 %v1810
    %v1812 = vpop.f32.mrf.mxu0
    %v1813 = vadd.f32 %v1702, %v1812
    %v1814 = vpop.f32.mrf.mxu0
    %1815 = vdwg.mxu0
    %v1816 = vmul.f32 %v971, %v1789
    %v1817 = vmul.f32 %v977, %v1795
    %v1818 = vmul.f32 %v983, %v1801
    %v1819 = vmul.f32 %v989, %v1807
    %v1820 = vmul.f32 %v995, %v1813
    %v1821 = vadd.f32 %v1816, %v1817
    %v1822 = vadd.f32 %v1821, %v1818
    %v1823 = vadd.f32 %v1822, %v1819
    %v1824 = vadd.f32 %v1823, %v1820
    %v1825 = vrot.slane %v1824, 4
    %v1826 = vadd.f32 %v1824, %v1825
    %v1827 = vrot.slane %v1826, 2
    %v1828 = vadd.f32 %v1826, %v1827
    %v1829 = vrot.slane %v1828, 1
    %v1830 = vadd.f32 %v1828, %v1829
    %v1831 = vxor.u32 %v1830, 2147483648
    %v1832 = vmul.f32 %v1831, 1.442695
    %v1833 = vpow.pop %v1832
    %v1834 = vadd.f32 %v1833, 1.0
    %v1835 = vrcp.pop %v1834
    %v1836 = vmul.f32 1.0, %v1835
    %1837 = vst [vmem:[#allocation8] sm:$0x1] %v1836
    // Predicated region
    $region30: #{tpu_custom_call.1} parent=1 // pred_check
      _
    $region31: #{tpu_custom_call.1} parent=1 // pred_check_branch
      %1839 = sbr.rel (0) target = $region33
    $region32: #{tpu_custom_call.1} parent=1 // pred_region
      %s1841 = ssub.s32 16, 16
      %1842 = vsyncadd [#allocation4], %s1841
      %s1844 = sshll.u32 [#allocation8], 4
      %s1845 = int_to_ptr.vmem [resolvable:$true] %s1844
      %1847 = dma.vmem_to_hbm [thread:$0]  %s1845, 16, %s4, [#allocation4]
    $region33: #{tpu_custom_call.1} parent=1 // pred_fallthru
      _
    // Predicated region
    $region34: #{tpu_custom_call.1} parent=1 // pred_check
      _
    $region35: #{tpu_custom_call.1} parent=1 // pred_check_branch
      %1849 = sbr.rel (0) target = $region37
    $region36: #{tpu_custom_call.1} parent=1 // pred_region
      %1850 = dma.done [#allocation4], 16
    $region37: #{tpu_custom_call.1} parent=1 // pred_fallthru
      _
    %1851 = vsyncpa [#allocation3], 1
    %1852 = vsyncpa [#allocation6], 1
    %1853 = vsyncpa [#allocation4], 1

</llo_original>
